<compile_context>
chip_gen: v6e
topology: v6e:2x2x1
jax: 0.10.0
libtpu: 0.0.40
codegen_flags: <defaults>
</compile_context>

<pallas_src>
import functools

import numpy as np

import jax
import jax.numpy as jnp
from jax.experimental import pallas as pl
from jax.experimental.pallas import tpu as pltpu


def _convup_kernel(x_ref, w_ref, b_ref, bt_ref, o_ref, z_ref, *,
                   B, Cout, Qh, Qw, Wq, L):
    """Fused strided-conv + bilinear-upsample for one batch block.

    x_ref : [B, Cs2d, Hq*Wq]   space-to-depth input (Cs2d = Cin*stride^2)
    w_ref : [Cout, Qh*Qw*Cs2d] conv weight, K ordered (qh, qw, ci, rh, rw)
    b_ref : [Cout, 1]          conv bias
    bt_ref: [L, TILE_UP]       zero-row-padded (Ah (x) Aw)^T upsample tile
    o_ref : [B, Cout, TILE_UP] lane-dense output block
    z_ref : [B*Cout, L]        f32 scratch: conv result, persists across the
                               up-tile grid axis (computed only at j == 0)
    """
    # ---- conv: in-VMEM "im2col" (contiguous lane slices) + MXU matmul ------
    @pl.when(pl.program_id(1) == 0)
    def _conv():
        for b in range(B):                           # static unroll, B small
            cols = []
            for q in range(Qh * Qw):                 # Qh*Qw shifted taps
                qh, qw = divmod(q, Qw)
                off = qh * Wq + qw                   # static lane offset
                cols.append(x_ref[b, :, off:off + L])          # [Cs2d, L]
            xcol = jnp.concatenate(cols, axis=0)               # [K, L]
            # TODO(synk): review suggests Precision.HIGH (bf16_3x); HIGHEST is
            # kept because it is guaranteed to lower and meets 1e-4 exactly.
            z = jnp.dot(w_ref[...], xcol,
                        preferred_element_type=jnp.float32,
                        precision=jax.lax.Precision.HIGHEST) + b_ref[...]
            z_ref[b * Cout:(b + 1) * Cout, :] = z              # [Cout, L]

    # ---- bilinear upsample: one matmul, batch stacked on the sublane axis --
    up = jnp.dot(z_ref[...], bt_ref[...],
                 preferred_element_type=jnp.float32,
                 precision=jax.lax.Precision.HIGHEST)          # [B*Cout, TILE]
    for b in range(B):
        o_ref[b] = up[b * Cout:(b + 1) * Cout, :].astype(o_ref.dtype)


def _bilinear_matrix_np(out_size, in_size):
    """[out, in] matrix A such that A @ v == 1-D linear resize, align_corners=True."""
    a = np.zeros((out_size, in_size), np.float32)
    if in_size == 1 or out_size == 1:
        a[:, 0] = 1.0
        return a
    src = np.arange(out_size, dtype=np.float64) * (in_size - 1) / (out_size - 1)
    lo = np.clip(np.floor(src).astype(np.int64), 0, in_size - 2)
    frac = (src - lo).astype(np.float32)
    rows = np.arange(out_size)
    a[rows, lo] += 1.0 - frac
    a[rows, lo + 1] += frac
    return a


def _pick_batch_block(n, cout):
    """Batch elements per grid step: target ~128 sublanes (B*Cout) on the
    upsample matmul, but keep >=2 parallel batch blocks when N allows so both
    v7x TensorCores get work."""
    b = max(1, min(n, 128 // max(cout, 1)))
    if n >= 2:
        b = max(1, min(b, n // 2))
    while n % b:
        b -= 1
    return b


def _pick_up_tile(total, k_rows, max_block_bytes=4 << 20):
    """Tile of the Hup*Wup axis: full if small, else a multiple of 128 that
    keeps the upsample-matrix block under ~4 MiB (v7x VMEM budget)."""
    cap = max(128, (max_block_bytes // (4 * max(k_rows, 1))) // 128 * 128)
    if total <= cap:
        return total
    for t in range(cap, 127, -128):
        if total % t == 0:
            return t
    return cap  # ragged last block: Pallas masks the out-of-bounds columns


@functools.partial(jax.jit, static_argnames=("stride", "padding", "scale"))
def conv_up(x, weight, bias, *, stride, padding, scale):
    """x: [N, Cin, H, W], weight: [Cout, Cin, KH, KW], bias: [Cout].

    `stride` is the conv stride AFTER ConvUp.__init__ multiplied it by `scale`.
    Returns [N, Cout, Ho*scale, Wo*scale] (NCHW), matching the PyTorch module.
    """
    N, Cin, H, W = x.shape
    Cout, _, KH, KW = weight.shape
    s = stride
    Ho = (H + 2 * padding - KH) // s + 1
    Wo = (W + 2 * padding - KW) // s + 1
    Hup, Wup = Ho * scale, Wo * scale

    # Space-to-depth factorization: a stride-s conv == a stride-1 conv with
    # Qh x Qw taps over Cin*s*s channels.
    Qh, Qw = -(-KH // s), -(-KW // s)
    Hq, Wq = Ho - 1 + Qh, Wo - 1 + Qw
    Cs2d = Cin * s * s
    Kfull = Qh * Qw * Cs2d
    # Lane span of one shifted tap on the flattened (Hq*Wq) spatial axis.
    # Lanes with wo in [Wo, Wq) are junk; the upsample matrix has zero rows
    # there so they never reach the output.
    L = (Ho - 1) * Wq + Wo

    # ---- XLA glue: ONE 1x copy (pad + space-to-depth transpose); no more
    # KH*KW-fold read-amplified im2col in HBM. -------------------------------
    pad_b = max(Hq * s - H - padding, 0)
    pad_r = max(Wq * s - W - padding, 0)
    x_pad = jnp.pad(x.astype(jnp.float32),
                    ((0, 0), (0, 0), (padding, pad_b), (padding, pad_r)))
    x_pad = x_pad[:, :, :Hq * s, :Wq * s]
    x_s2d = (x_pad.reshape(N, Cin, Hq, s, Wq, s)
             .transpose(0, 1, 3, 5, 2, 4)            # [N, Cin, rh, rw, Hq, Wq]
             .reshape(N, Cs2d, Hq * Wq))

    # Conv weight regrouped to match the in-kernel patch order (qh,qw,ci,rh,rw)
    w_padded = jnp.pad(weight.astype(jnp.float32),
                       ((0, 0), (0, 0), (0, Qh * s - KH), (0, Qw * s - KW)))
    w2d = (w_padded.reshape(Cout, Cin, Qh, s, Qw, s)
           .transpose(0, 2, 4, 1, 3, 5)              # [co, qh, qw, ci, rh, rw]
           .reshape(Cout, Kfull))
    b2d = bias.reshape(Cout, 1).astype(jnp.float32)

    # Bilinear (align_corners=True) upsample as one Kronecker matmul; built
    # host-side with numpy (baked constant), rows scattered onto the L-wide
    # junk-padded conv lane axis (zero rows for the junk lanes).
    bt_kron = np.kron(_bilinear_matrix_np(Hup, Ho),
                      _bilinear_matrix_np(Wup, Wo)).T       # [Ho*Wo, Hup*Wup]
    bt_np = np.zeros((L, Hup * Wup), np.float32)
    pos = (np.arange(Ho)[:, None] * Wq + np.arange(Wo)[None, :]).reshape(-1)
    bt_np[pos, :] = bt_kron
    bt = jnp.asarray(bt_np)

    # ---- grid: (batch blocks, up-tiles). ------------------------------------
    B = _pick_batch_block(N, Cout)
    tile_up = _pick_up_tile(Hup * Wup, L)
    nb, nj = N // B, pl.cdiv(Hup * Wup, tile_up)

    kernel = functools.partial(_convup_kernel, B=B, Cout=Cout,
                               Qh=Qh, Qw=Qw, Wq=Wq, L=L)

    cost = pl.CostEstimate(
        flops=2 * N * Cout * L * (Kfull + Hup * Wup),
        transcendentals=0,
        bytes_accessed=4 * (N * Cs2d * Hq * Wq + Cout * Kfull + Cout
                            + L * Hup * Wup + N * Cout * Hup * Wup))

    out_flat = pl.pallas_call(
        kernel,
        out_shape=jax.ShapeDtypeStruct((N, Cout, Hup * Wup), x.dtype),
        grid=(nb, nj),
        in_specs=[
            pl.BlockSpec((B, Cs2d, Hq * Wq), lambda n, j: (n, 0, 0)),
            # TODO(synk): pipeline_mode=pl.Buffered(1) on these constant-index
            # operands (w, b, bt) would halve their VMEM footprint on v7x.
            pl.BlockSpec((Cout, Kfull), lambda n, j: (0, 0)),
            pl.BlockSpec((Cout, 1), lambda n, j: (0, 0)),
            pl.BlockSpec((L, tile_up), lambda n, j: (0, j)),
        ],
        out_specs=pl.BlockSpec((B, Cout, tile_up), lambda n, j: (n, 0, j)),
        scratch_shapes=[pltpu.VMEM((B * Cout, L), jnp.float32)],
        compiler_params=pltpu.CompilerParams(
            dimension_semantics=("parallel", "arbitrary")),
        cost_estimate=cost,
    )(x_s2d, w2d, b2d, bt)

    return out_flat.reshape(N, Cout, Hup, Wup)


if __name__ == "__main__":
    # Module config: conv = Conv2d(4, 8, kernel_size=3, stride=1, padding=1);
    # ConvUp(conv, scale=2, mode='bilinear') -> conv stride becomes 2 and the
    # upsample is scale_factor=2, bilinear, align_corners=True.
    N, Cin, H, W = 2, 4, 16, 16
    Cout, KH, KW = 8, 3, 3
    scale = 2
    conv_stride = 1 * scale          # stride doubled inside ConvUp.__init__
    padding = 1

    key = jax.random.PRNGKey(0)
    kx, kw_, kb = jax.random.split(key, 3)
    x = jax.random.normal(kx, (N, Cin, H, W), dtype=jnp.float32)
    weight = 0.1 * jax.random.normal(kw_, (Cout, Cin, KH, KW), dtype=jnp.float32)
    bias = 0.1 * jax.random.normal(kb, (Cout,), dtype=jnp.float32)

    out = conv_up(x, weight, bias, stride=conv_stride, padding=padding,
                  scale=scale)
    out = jax.block_until_ready(out)

    Ho = (H + 2 * padding - KH) // conv_stride + 1
    Wo = (W + 2 * padding - KW) // conv_stride + 1
    assert out.shape == (N, Cout, Ho * scale, Wo * scale), out.shape
    assert out.dtype == jnp.float32

    # Reference: XLA conv (HIGHEST) + separable bilinear upsample (HIGHEST).
    y_ref = jax.lax.conv_general_dilated(
        x, weight, window_strides=(conv_stride, conv_stride),
        padding=[(padding, padding), (padding, padding)],
        dimension_numbers=("NCHW", "OIHW", "NCHW"),
        precision=jax.lax.Precision.HIGHEST) + bias[None, :, None, None]
    ah = jnp.asarray(_bilinear_matrix_np(Ho * scale, Ho))
    aw = jnp.asarray(_bilinear_matrix_np(Wo * scale, Wo))
    ref = jnp.einsum("ph,nchw,qw->ncpq", ah, y_ref, aw,
                     precision=jax.lax.Precision.HIGHEST)
    err = float(jnp.max(jnp.abs(out - ref)))
    assert jnp.allclose(out, ref, atol=1e-4, rtol=1e-4), err

    print("KERNEL_OK")
</pallas_src>

<mosaic_0001>
module attributes {stable_mosaic.version = 11 : i64} {
  func.func @_convup_kernel(%arg0: i32, %arg1: i32, %arg2: memref<1x16x81xf32, #tpu.memory_space<vmem>>, %arg3: memref<8x64xf32, #tpu.memory_space<vmem>>, %arg4: memref<8x1xf32, #tpu.memory_space<vmem>>, %arg5: memref<71x256xf32, #tpu.memory_space<vmem>>, %arg6: memref<1x8x256xf32, #tpu.memory_space<vmem>>, %arg7: memref<8x71xf32, #tpu.memory_space<vmem>>) attributes {dimension_semantics = [#tpu.dimension_semantics<parallel>, #tpu.dimension_semantics<arbitrary>], iteration_bounds = array<i64: 2, 1>, scalar_prefetch = 0 : i64, scratch_operands = 1 : i64, tpu.core_type = #tpu.core_type<tc>, window_params = [{transform_indices = @transform_0, window_bounds = array<i64: 1, 16, 81>}, {pipeline_mode = #tpu.pipeline_mode<synchronous>, transform_indices = @transform_1, window_bounds = array<i64: 8, 64>}, {pipeline_mode = #tpu.pipeline_mode<synchronous>, transform_indices = @transform_2, window_bounds = array<i64: 8, 1>}, {transform_indices = @transform_3, window_bounds = array<i64: 71, 256>}, {transform_indices = @transform_4, window_bounds = array<i64: 1, 8, 256>}]} {
    %c0_i32 = arith.constant 0 : i32
    %0 = arith.cmpi eq, %arg1, %c0_i32 : i32
    %1 = arith.extui %0 : i1 to i32
    %c0_i32_0 = arith.constant 0 : i32
    %2 = arith.cmpi ne, %1, %c0_i32_0 : i32
    scf.if %2 {
      %c0_7 = arith.constant 0 : index
      %c0_8 = arith.constant 0 : index
      %c0_9 = arith.constant 0 : index
      %9 = vector.load %arg2[%c0_7, %c0_8, %c0_9] : memref<1x16x81xf32, #tpu.memory_space<vmem>>, vector<1x16x71xf32>
      %10 = vector.shape_cast %9 : vector<1x16x71xf32> to vector<16x71xf32>
      %c0_10 = arith.constant 0 : index
      %c0_11 = arith.constant 0 : index
      %c1 = arith.constant 1 : index
      %11 = vector.load %arg2[%c0_10, %c0_11, %c1] : memref<1x16x81xf32, #tpu.memory_space<vmem>>, vector<1x16x71xf32>
      %12 = vector.shape_cast %11 : vector<1x16x71xf32> to vector<16x71xf32>
      %c0_12 = arith.constant 0 : index
      %c0_13 = arith.constant 0 : index
      %c9 = arith.constant 9 : index
      %13 = vector.load %arg2[%c0_12, %c0_13, %c9] : memref<1x16x81xf32, #tpu.memory_space<vmem>>, vector<1x16x71xf32>
      %14 = vector.shape_cast %13 : vector<1x16x71xf32> to vector<16x71xf32>
      %c0_14 = arith.constant 0 : index
      %c0_15 = arith.constant 0 : index
      %c10 = arith.constant 10 : index
      %15 = vector.load %arg2[%c0_14, %c0_15, %c10] : memref<1x16x81xf32, #tpu.memory_space<vmem>>, vector<1x16x71xf32>
      %16 = vector.shape_cast %15 : vector<1x16x71xf32> to vector<16x71xf32>
      %17 = tpu.concatenate %10, %12, %14, %16 in 0 : vector<16x71xf32>, vector<16x71xf32>, vector<16x71xf32>, vector<16x71xf32> -> vector<64x71xf32>
      %c0_16 = arith.constant 0 : index
      %c0_17 = arith.constant 0 : index
      %18 = vector.load %arg3[%c0_16, %c0_17] : memref<8x64xf32, #tpu.memory_space<vmem>>, vector<8x64xf32>
      %cst_18 = arith.constant dense<0.000000e+00> : vector<8x71xf32>
      %19 = tpu.matmul %18, %17, %cst_18 {dimension_numbers = #tpu.dot_dimension_numbers<[1], [0], [0], [1], [0, 0, 1, 1], [], []>, precision = #tpu.contract_precision<fp32>} : vector<8x64xf32>, vector<64x71xf32>, vector<8x71xf32> -> vector<8x71xf32>
      %c0_19 = arith.constant 0 : index
      %c0_20 = arith.constant 0 : index
      %20 = vector.load %arg4[%c0_19, %c0_20] : memref<8x1xf32, #tpu.memory_space<vmem>>, vector<8x1xf32>
      %21 = vector.broadcast %20 : vector<8x1xf32> to vector<8x71xf32>
      %22 = arith.addf %19, %21 : vector<8x71xf32>
      %c0_21 = arith.constant 0 : index
      %c0_22 = arith.constant 0 : index
      %23 = vector.load %arg7[%c0_21, %c0_22] : memref<8x71xf32, #tpu.memory_space<vmem>>, vector<8x71xf32>
      tpu.vector_store %arg7[%c0_21, %c0_22], %22 {strides = array<i32>} : memref<8x71xf32, #tpu.memory_space<vmem>>, vector<8x71xf32>,
    } else {
    }
    %c0 = arith.constant 0 : index
    %c0_1 = arith.constant 0 : index
    %3 = vector.load %arg7[%c0, %c0_1] : memref<8x71xf32, #tpu.memory_space<vmem>>, vector<8x71xf32>
    %c0_2 = arith.constant 0 : index
    %c0_3 = arith.constant 0 : index
    %4 = vector.load %arg5[%c0_2, %c0_3] : memref<71x256xf32, #tpu.memory_space<vmem>>, vector<71x256xf32>
    %cst = arith.constant dense<0.000000e+00> : vector<8x256xf32>
    %5 = tpu.matmul %3, %4, %cst {dimension_numbers = #tpu.dot_dimension_numbers<[1], [0], [0], [1], [0, 0, 1, 1], [], []>, precision = #tpu.contract_precision<fp32>} : vector<8x71xf32>, vector<71x256xf32>, vector<8x256xf32> -> vector<8x256xf32>
    %c0_4 = arith.constant 0 : index
    %c0_5 = arith.constant 0 : index
    %c0_6 = arith.constant 0 : index
    %6 = vector.load %arg6[%c0_4, %c0_5, %c0_6] : memref<1x8x256xf32, #tpu.memory_space<vmem>>, vector<1x8x256xf32>
    %7 = vector.shape_cast %6 : vector<1x8x256xf32> to vector<8x256xf32>
    %8 = vector.shape_cast %5 : vector<8x256xf32> to vector<1x8x256xf32>
    tpu.vector_store %arg6[%c0_4, %c0_5, %c0_6], %8 {strides = array<i32>} : memref<1x8x256xf32, #tpu.memory_space<vmem>>, vector<1x8x256xf32>,
    return
  }
  func.func @transform_0(%arg0: i32, %arg1: i32) -> (i32, i32, i32) {
    %c0_i32 = arith.constant 0 : i32
    %c0_i32_0 = arith.constant 0 : i32
    %c0_i32_1 = arith.constant 0 : i32
    return %arg0, %c0_i32, %c0_i32_0 : i32, i32, i32
  }
  func.func @transform_1(%arg0: i32, %arg1: i32) -> (i32, i32) {
    %c0_i32 = arith.constant 0 : i32
    %c0_i32_0 = arith.constant 0 : i32
    %c0_i32_1 = arith.constant 0 : i32
    return %c0_i32, %c0_i32_0 : i32, i32
  }
  func.func @transform_2(%arg0: i32, %arg1: i32) -> (i32, i32) {
    %c0_i32 = arith.constant 0 : i32
    %c0_i32_0 = arith.constant 0 : i32
    %c0_i32_1 = arith.constant 0 : i32
    return %c0_i32, %c0_i32_0 : i32, i32
  }
  func.func @transform_3(%arg0: i32, %arg1: i32) -> (i32, i32) {
    %c0_i32 = arith.constant 0 : i32
    %c0_i32_0 = arith.constant 0 : i32
    return %c0_i32, %arg1 : i32, i32
  }
  func.func @transform_4(%arg0: i32, %arg1: i32) -> (i32, i32, i32) {
    %c0_i32 = arith.constant 0 : i32
    %c0_i32_0 = arith.constant 0 : i32
    return %arg0, %c0_i32, %arg1 : i32, i32, i32
  }
}

</mosaic_0001>

<llo_original>
// kernel: conv_up.1
$region0: #{conv_up.1}
  #allocation0 [shape = 'u32[]', space=smem, size = 0x4, offset = 0x4, fixed_abs, tag = 'smem constant byte address 0x4 - core index']
  #allocation1 [shape = 'u32[144,128]{1,0:T(1,128)}', space=vmem, size = 0x12000, scoped, tag = 'internal scratch']
  #allocation2 [shape = 'f32[8,71]{1,0:T(8,128)}', space=vmem, size = 0x1000, scoped, tag = 'scratch operand']
  %s0 = inlined_call_operand.vmem [shape: f32[2,16,81], index: 0, kind: input, shape index: {}]
  %s1 = inlined_call_operand.vmem [shape: f32[8,64], index: 1, kind: input, shape index: {}]
  %s2 = inlined_call_operand.vmem [shape: f32[8,1], index: 2, kind: input, shape index: {}]
  %s3 = inlined_call_operand.vmem [shape: f32[71,256], index: 3, kind: input, shape index: {}]
  %s4 = inlined_call_operand.vmem [shape: f32[2,8,256], index: 4, kind: output, shape index: {}]
  %s5 = sld [smem:[#allocation0]]
  $region53: #{conv_up.1} parent=0
    _
  %s7 = ssub.s32 1, %s5
  %s8 = scalar_select 0, %s7, %s5
  loop: start=0, step=1, limit=4
  $region2: #{conv_up.1} parent=0 // loop_pre_header
    _
  $region3: #{conv_up.1} parent=0 // loop_header
    %s10 = sphi 0, %s14
    %p11 = scmp.ge.s32.totalorder %s10, 4
    %s17 = sphi 0, %s29
    %s18 = sphi 0, %s25
    %s19 = sphi 0, %s17
    %s20 = sphi 0, %s18
    %s21 = sphi 0, %s19
    %s22 = sphi 0, %s20
    %s32 = sphi 0, %s34
    %s35 = sphi 0, %s32
    %s36 = sphi 0, %s35
    %s52 = sphi 0, %s36
    %s56 = sphi 0, %s56
    %s58 = sphi 0, %s56
    %s59 = sphi 0, %s58
    %s73 = sphi 0, %s59
    %s77 = sphi 0, %s77
    %s79 = sphi 0, %s77
    %s80 = sphi 0, %s79
    %s94 = sphi 0, %s80
    %s100 = sphi 0, %s102
    %s103 = sphi 0, %s100
    %s104 = sphi 0, %s103
    %s120 = sphi 0, %s104
    %s128 = sphi 0, %s130
    %s131 = sphi 0, %s128
    %s132 = sphi 0, %s131
    %s148 = sphi 0, %s132
  $region4: #{conv_up.1} parent=0 // loop_header_branch
    %13 = sbr.rel (%p11) target = $region8
  $region5: #{conv_up.1} parent=0 // loop_body
    %s15 = ssub.s32 %s10, 1
    %s16 = ssub.s32 %s10, 2
    %s23 = sadd.s32 1, %s18
    %p24 = scmp.ge.s32.totalorder %s23, 1
    %s25 = scalar_select %p24, 0, %s23
    %s26 = sadd.s32 1, %s17
    %s27 = scalar_select %p24, %s26, %s17
    %p28 = scmp.ge.s32.totalorder %s27, 2
    %s29 = scalar_select %p28, 0, %s27
    %s30 = ssub.s32 %s17, %s29
    %p31 = scmp.eq.s32.totalorder %s30, 0
    %s33 = sadd.s32 %s32, 1
    %s34 = scalar_select %p31, %s32, %s33
    %p37 = pneg %p31
    %p38 = scmp.eq.s32.totalorder %s10, 1
    %p39 = por %p37, %p38
    %p40 = scmp.ne.s32.totalorder %s32, %s35
    %p41 = scmp.eq.s32.totalorder %s10, 0
    %p42 = por %p40, %p41
    %p43 = scmp.ne.s32.totalorder %s32, %s35
    %p44 = scmp.eq.s32.totalorder %s15, 1
    %p45 = por %p43, %p44
    %p46 = scmp.ne.s32.totalorder %s35, %s36
    %p47 = scmp.eq.s32.totalorder %s15, 0
    %p48 = por %p46, %p47
    %p49 = scmp.ne.s32.totalorder %s35, %s36
    %p50 = scmp.eq.s32.totalorder %s16, 1
    %p51 = por %p49, %p50
    %p53 = scmp.ne.s32.totalorder %s36, %s52
    %p54 = scmp.eq.s32.totalorder %s16, 0
    %p55 = por %p53, %p54
    %s57 = sadd.s32 %s56, 1
    %p60 = scmp.eq.s32.totalorder %s10, 1
    %p61 = scmp.ne.s32.totalorder %s56, %s58
    %p62 = scmp.eq.s32.totalorder %s10, 0
    %p63 = por %p61, %p62
    %p64 = scmp.ne.s32.totalorder %s56, %s58
    %p65 = scmp.eq.s32.totalorder %s15, 1
    %p66 = por %p64, %p65
    %p67 = scmp.ne.s32.totalorder %s58, %s59
    %p68 = scmp.eq.s32.totalorder %s15, 0
    %p69 = por %p67, %p68
    %p70 = scmp.ne.s32.totalorder %s58, %s59
    %p71 = scmp.eq.s32.totalorder %s16, 1
    %p72 = por %p70, %p71
    %p74 = scmp.ne.s32.totalorder %s59, %s73
    %p75 = scmp.eq.s32.totalorder %s16, 0
    %p76 = por %p74, %p75
    %s78 = sadd.s32 %s77, 1
    %p81 = scmp.eq.s32.totalorder %s10, 1
    %p82 = scmp.ne.s32.totalorder %s77, %s79
    %p83 = scmp.eq.s32.totalorder %s10, 0
    %p84 = por %p82, %p83
    %p85 = scmp.ne.s32.totalorder %s77, %s79
    %p86 = scmp.eq.s32.totalorder %s15, 1
    %p87 = por %p85, %p86
    %p88 = scmp.ne.s32.totalorder %s79, %s80
    %p89 = scmp.eq.s32.totalorder %s15, 0
    %p90 = por %p88, %p89
    %p91 = scmp.ne.s32.totalorder %s79, %s80
    %p92 = scmp.eq.s32.totalorder %s16, 1
    %p93 = por %p91, %p92
    %p95 = scmp.ne.s32.totalorder %s80, %s94
    %p96 = scmp.eq.s32.totalorder %s16, 0
    %p97 = por %p95, %p96
    %s98 = ssub.s32 %s18, %s25
    %p99 = scmp.eq.s32.totalorder %s98, 0
    %s101 = sadd.s32 %s100, 1
    %s102 = scalar_select %p99, %s100, %s101
    %p105 = pneg %p99
    %p106 = scmp.eq.s32.totalorder %s10, 1
    %p107 = por %p105, %p106
    %p108 = scmp.ne.s32.totalorder %s100, %s103
    %p109 = scmp.eq.s32.totalorder %s10, 0
    %p110 = por %p108, %p109
    %p111 = scmp.ne.s32.totalorder %s100, %s103
    %p112 = scmp.eq.s32.totalorder %s15, 1
    %p113 = por %p111, %p112
    %p114 = scmp.ne.s32.totalorder %s103, %s104
    %p115 = scmp.eq.s32.totalorder %s15, 0
    %p116 = por %p114, %p115
    %p117 = scmp.ne.s32.totalorder %s103, %s104
    %p118 = scmp.eq.s32.totalorder %s16, 1
    %p119 = por %p117, %p118
    %p121 = scmp.ne.s32.totalorder %s104, %s120
    %p122 = scmp.eq.s32.totalorder %s16, 0
    %p123 = por %p121, %p122
    %s124 = ssub.s32 %s17, %s29
    %s125 = ssub.s32 %s18, %s25
    %s126 = sor.u32 %s124, %s125
    %p127 = scmp.eq.s32.totalorder %s126, 0
    %s129 = sadd.s32 %s128, 1
    %s130 = scalar_select %p127, %s128, %s129
    %p133 = pneg %p127
    %p134 = scmp.eq.s32.totalorder %s10, 1
    %p135 = por %p133, %p134
    %p136 = scmp.ne.s32.totalorder %s128, %s131
    %p137 = scmp.eq.s32.totalorder %s10, 0
    %p138 = por %p136, %p137
    %p139 = scmp.ne.s32.totalorder %s128, %s131
    %p140 = scmp.eq.s32.totalorder %s15, 1
    %p141 = por %p139, %p140
    %p142 = scmp.ne.s32.totalorder %s131, %s132
    %p143 = scmp.eq.s32.totalorder %s15, 0
    %p144 = por %p142, %p143
    %p145 = scmp.ne.s32.totalorder %s131, %s132
    %p146 = scmp.eq.s32.totalorder %s16, 1
    %p147 = por %p145, %p146
    %p149 = scmp.ne.s32.totalorder %s132, %s148
    %p150 = scmp.eq.s32.totalorder %s16, 0
    %p151 = por %p149, %p150
    %p152 = scmp.le.s32.totalorder 1, %s10
    %p153 = scmp.lt.s32.totalorder %s10, 3
    %p154 = pnand %p152, %p153
    %p155 = pneg %p154
    // Predicated region
    $region9: #{conv_up.1} parent=5 // pred_check
      _
    $region10: #{conv_up.1} parent=5 // pred_check_branch
      %157 = sbr.rel (%p154) target = $region12
    $region11: #{conv_up.1} parent=5 // pred_region
      %s158 = ssub.s32 %s10, 1
      // Predicated region
      $region13: #{conv_up.1} parent=11 // pred_check
        %p159 = pneg %p69
      $region14: #{conv_up.1} parent=11 // pred_check_branch
        %161 = sbr.rel (%p159) target = $region16
      $region15: #{conv_up.1} parent=11 // pred_region
        _
      $region16: #{conv_up.1} parent=11 // pred_fallthru
        _
      // Predicated region
      $region17: #{conv_up.1} parent=11 // pred_check
        %p162 = pneg %p90
      $region18: #{conv_up.1} parent=11 // pred_check_branch
        %164 = sbr.rel (%p162) target = $region20
      $region19: #{conv_up.1} parent=11 // pred_region
        _
      $region20: #{conv_up.1} parent=11 // pred_fallthru
        _
      // Predicated region
      $region21: #{conv_up.1} parent=11 // pred_check
        %p165 = pneg %p116
      $region22: #{conv_up.1} parent=11 // pred_check_branch
        %167 = sbr.rel (%p165) target = $region24
      $region23: #{conv_up.1} parent=11 // pred_region
        %s168 = smul.u32 2, %s20
        %p169 = scmp.lt.s32.totalorder %s168, 1
        %s170 = scalar_select %p169, %s168, 1
        %s171 = smul.addr %s170, 8
        %s172 = scalar_lea.vmem %s3, %s171
        %s173 = smul.u32 2, %s20
      $region24: #{conv_up.1} parent=11 // pred_fallthru
        _
    $region12: #{conv_up.1} parent=5 // pred_fallthru
      _
    %p174 = scmp.lt.s32.totalorder %s10, 2
    // Predicated region
    $region25: #{conv_up.1} parent=5 // pred_check
      %p175 = pneg %p174
    $region26: #{conv_up.1} parent=5 // pred_check_branch
      %177 = sbr.rel (%p175) target = $region28
    $region27: #{conv_up.1} parent=5 // pred_region
      // Predicated region
      $region29: #{conv_up.1} parent=27 // pred_check
        %p178 = pneg %p42
      $region30: #{conv_up.1} parent=27 // pred_check_branch
        %180 = sbr.rel (%p178) target = $region32
      $region31: #{conv_up.1} parent=27 // pred_region
        %p181 = scmp.lt.s32.totalorder %s17, 1
        %s182 = scalar_select %p181, %s17, 1
        %s183 = smul.addr %s182, 2
        %s184 = smul.addr %s183, 8
        %s185 = scalar_lea.vmem %s0, %s184
      $region32: #{conv_up.1} parent=27 // pred_fallthru
        _
    $region28: #{conv_up.1} parent=5 // pred_fallthru
      _
    %p186 = scmp.le.s32.totalorder 1, %s10
    %p187 = scmp.lt.s32.totalorder %s10, 3
    %p188 = pnand %p186, %p187
    %p189 = pneg %p188
    // Predicated region
    $region33: #{conv_up.1} parent=5 // pred_check
      _
    $region34: #{conv_up.1} parent=5 // pred_check_branch
      %191 = sbr.rel (%p188) target = $region36
    $region35: #{conv_up.1} parent=5 // pred_region
      %s192 = ssub.s32 %s10, 1
      %p193 = scmp.lt.s32.totalorder %s19, 1
      %s194 = scalar_select %p193, %s19, 1
      %s195 = smul.addr %s194, 2
      %s196 = smul.addr %s195, 8
      %s197 = scalar_lea.vmem %s0, %s196
      %p198 = pneg %p48
      %p199 = pneg %p45
      %p200 = pneg %p69
      %p201 = pneg %p66
      %p202 = pneg %p90
      %p203 = pneg %p87
      %s204 = smul.u32 2, %s20
      %p205 = scmp.lt.s32.totalorder %s204, 1
      %s206 = scalar_select %p205, %s204, 1
      %s207 = smul.addr %s206, 8
      %s208 = scalar_lea.vmem %s3, %s207
      %p209 = pneg %p116
      %p210 = pneg %p113
      %p211 = pneg %p144
      %p212 = pneg %p141
      %s213 = smul.u32 2, %s20
      %p214 = scmp.lt.s32.totalorder %s19, 1
      %s215 = scalar_select %p214, %s19, 1
      %p216 = scmp.lt.s32.totalorder %s213, 1
      %s217 = scalar_select %p216, %s213, 1
      %s218 = smul.addr %s215, 2
      %s219 = sadd.s32 %s217, %s218
      %s220 = smul.addr %s219, 8
      %s221 = scalar_lea.vmem %s4, %s220
      %p222 = scmp.lt.s32.totalorder %s19, 1
      %s223 = scalar_select %p222, %s19, 1
      %s224 = smul.addr %s223, 2
      %s225 = smul.addr %s224, 8
      %s226 = scalar_lea.vmem %s0, %s225
      %s227 = smul.u32 2, %s20
      %p228 = scmp.lt.s32.totalorder %s227, 1
      %s229 = scalar_select %p228, %s227, 1
      %s230 = smul.addr %s229, 8
      %s231 = scalar_lea.vmem %s3, %s230
      %s232 = smul.u32 2, %s20
      %s233 = smul.u32 2, %s20
      %p234 = scmp.lt.s32.totalorder %s19, 1
      %s235 = scalar_select %p234, %s19, 1
      %p236 = scmp.lt.s32.totalorder %s233, 1
      %s237 = scalar_select %p236, %s233, 1
      %s238 = smul.addr %s235, 2
      %s239 = sadd.s32 %s237, %s238
      %s240 = smul.addr %s239, 8
      %s241 = scalar_lea.vmem %s4, %s240
      %s242 = smul.u32 2, %s20
      %p243 = scmp.eq.s32.totalorder %s20, 0
      // Predicated region
      $region37: #{conv_up.1} parent=35 // pred_check
        %p244 = pneg %p243
      $region38: #{conv_up.1} parent=35 // pred_check_branch
        %246 = sbr.rel (%p244) target = $region40
      $region39: #{conv_up.1} parent=35 // pred_region
        %v247 = vld [vmem:[%s226] sm:$0xff]
        %v248 = vld [vmem:[%s226 + $0x8] sm:$0xff]
        %251 = vrot.lane.b32.xlu0 %v247, 127
        %v252 = vpop.permute.xlu0 %251
        %253 = vrot.lane.b32.xlu0 %v248, 127
        %v254 = vpop.permute.xlu0 %253
        %257 = vrot.lane.b32.xlu0 %v247, 119
        %v258 = vpop.permute.xlu0 %257
        %259 = vrot.lane.b32.xlu0 %v248, 119
        %v260 = vpop.permute.xlu0 %259
        %263 = vrot.lane.b32.xlu0 %v247, 118
        %v264 = vpop.permute.xlu0 %263
        %265 = vrot.lane.b32.xlu0 %v248, 118
        %v266 = vpop.permute.xlu0 %265
        %v269 = vld [vmem:[%s1] sm:$0xff]
        %v270 = vld [vmem:[%s2] sm:$0xff]
        %272 = vset.pattern.permute.xlu0 0
        %273 = vperm.xlu0 %272, %v270
        %v274 = vpop.permute.xlu0 %273
        %vm276 = vcmask 523264
        %v278 = vsel %vm276, %v269, 0
        %280 = vmatprep.subr.mxu0 0.0
        %281 = vmatpush1.msra.mxu0 0.0
        %282 = vmatprep.subr.mxu0 0.0
        %283 = vmatpush1.msra.mxu0 0.0
        %284 = vmatprep.subr.mxu0 0.0
        %285 = vmatpush1.msra.mxu0 0.0
        %286 = vmatprep.subr.mxu0 0.0
        %287 = vmatpush1.msra.mxu0 0.0
        %288 = vmatprep.subr.mxu0 0.0
        %289 = vmatpush1.msra.mxu0 0.0
        %290 = vmatprep.subr.mxu0 0.0
        %291 = vmatpush1.msra.mxu0 0.0
        %292 = vmatprep.subr.mxu0 0.0
        %293 = vmatpush1.msra.mxu0 0.0
        %294 = vmatprep.subr.mxu0 0.0
        %295 = vmatpush1.msra.mxu0 0.0
        %296 = vmatprep.subr.mxu0 0.0
        %v297 = vand.u32 %v266, 4294901760
        %298 = vmatpush1.msra.mxu0 %v297
        %299 = vmatprep.subr.mxu0 0.0
        %v300 = vand.u32 %v264, 4294901760
        %301 = vmatpush1.msra.mxu0 %v300
        %302 = vmatprep.subr.mxu0 0.0
        %v303 = vand.u32 %v260, 4294901760
        %304 = vmatpush1.msra.mxu0 %v303
        %305 = vmatprep.subr.mxu0 0.0
        %v306 = vand.u32 %v258, 4294901760
        %307 = vmatpush1.msra.mxu0 %v306
        %308 = vmatprep.subr.mxu0 0.0
        %v309 = vand.u32 %v254, 4294901760
        %310 = vmatpush1.msra.mxu0 %v309
        %311 = vmatprep.subr.mxu0 0.0
        %v312 = vand.u32 %v252, 4294901760
        %313 = vmatpush1.msra.mxu0 %v312
        %314 = vmatprep.subr.mxu0 0.0
        %v315 = vand.u32 %v248, 4294901760
        %316 = vmatpush1.msra.mxu0 %v315
        %317 = vmatprep.subr.mxu0 0.0
        %v318 = vand.u32 %v247, 4294901760
        %319 = vmatpush1.msra.mxu0 %v318
        %320 = vmatprep.subr.mxu0 0.0
        %321 = vmatpush2.msra.mxu0 0.0
        %322 = vmatprep.subr.mxu0 0.0
        %323 = vmatpush2.msra.mxu0 0.0
        %324 = vmatprep.subr.mxu0 0.0
        %325 = vmatpush2.msra.mxu0 0.0
        %326 = vmatprep.subr.mxu0 0.0
        %327 = vmatpush2.msra.mxu0 0.0
        %328 = vmatprep.subr.mxu0 0.0
        %329 = vmatpush2.msra.mxu0 0.0
        %330 = vmatprep.subr.mxu0 0.0
        %331 = vmatpush2.msra.mxu0 0.0
        %332 = vmatprep.subr.mxu0 0.0
        %333 = vmatpush2.msra.mxu0 0.0
        %334 = vmatprep.subr.mxu0 0.0
        %335 = vmatpush2.msra.mxu0 0.0
        %336 = vmatprep.subr.mxu0 0.0
        %337 = vmatpush2.msra.mxu0 0.0
        %338 = vmatprep.subr.mxu0 0.0
        %339 = vmatpush2.msra.mxu0 0.0
        %340 = vmatprep.subr.mxu0 0.0
        %341 = vmatpush2.msra.mxu0 0.0
        %342 = vmatprep.subr.mxu0 0.0
        %343 = vmatpush2.msra.mxu0 0.0
        %344 = vmatprep.subr.mxu0 0.0
        %345 = vmatpush2.msra.mxu0 0.0
        %346 = vmatprep.subr.mxu0 0.0
        %347 = vmatpush2.msra.mxu0 0.0
        %348 = vmatprep.subr.mxu0 0.0
        %349 = vmatpush2.msra.mxu0 0.0
        %350 = vmatprep.subr.mxu0 0.0
        %351 = vmatpush2.msra.mxu0 0.0
        %352 = vmatprep.mubr.f32.mxu0 0.0
        %v353 = vand.u32 %v278, 4294901760
        %v354 = vsub.f32 %v278, %v353
        %v355 = vand.u32 %v354, 4294901760
        %v356 = vsub.f32 %v354, %v355
        %v357 = vand.u32 %v356, 4294901760
        %358 = vmatmul.mubr.f32.gmra.mxu0 %v357
        %v359 = vpop.f32.mrf.mxu0
        %v360 = vadd.f32 %v274, %v359
        %v361 = vpop.f32.mrf.mxu0
        %362 = vdwg.mxu0
        %363 = vmatprep.subr.mxu0 0.0
        %364 = vmatpush1.msra.mxu0 0.0
        %365 = vmatprep.subr.mxu0 0.0
        %366 = vmatpush1.msra.mxu0 0.0
        %367 = vmatprep.subr.mxu0 0.0
        %368 = vmatpush1.msra.mxu0 0.0
        %369 = vmatprep.subr.mxu0 0.0
        %370 = vmatpush1.msra.mxu0 0.0
        %371 = vmatprep.subr.mxu0 0.0
        %372 = vmatpush1.msra.mxu0 0.0
        %373 = vmatprep.subr.mxu0 0.0
        %374 = vmatpush1.msra.mxu0 0.0
        %375 = vmatprep.subr.mxu0 0.0
        %376 = vmatpush1.msra.mxu0 0.0
        %377 = vmatprep.subr.mxu0 0.0
        %378 = vmatpush1.msra.mxu0 0.0
        %379 = vmatprep.subr.mxu0 0.0
        %v380 = vand.u32 %v266, 4294901760
        %v381 = vsub.f32 %v266, %v380
        %v382 = vand.u32 %v381, 4294901760
        %v383 = vsub.f32 %v381, %v382
        %v384 = vand.u32 %v383, 4294901760
        %385 = vmatpush1.msra.mxu0 %v384
        %386 = vmatprep.subr.mxu0 0.0
        %v387 = vand.u32 %v264, 4294901760
        %v388 = vsub.f32 %v264, %v387
        %v389 = vand.u32 %v388, 4294901760
        %v390 = vsub.f32 %v388, %v389
        %v391 = vand.u32 %v390, 4294901760
        %392 = vmatpush1.msra.mxu0 %v391
        %393 = vmatprep.subr.mxu0 0.0
        %v394 = vand.u32 %v260, 4294901760
        %v395 = vsub.f32 %v260, %v394
        %v396 = vand.u32 %v395, 4294901760
        %v397 = vsub.f32 %v395, %v396
        %v398 = vand.u32 %v397, 4294901760
        %399 = vmatpush1.msra.mxu0 %v398
        %400 = vmatprep.subr.mxu0 0.0
        %v401 = vand.u32 %v258, 4294901760
        %v402 = vsub.f32 %v258, %v401
        %v403 = vand.u32 %v402, 4294901760
        %v404 = vsub.f32 %v402, %v403
        %v405 = vand.u32 %v404, 4294901760
        %406 = vmatpush1.msra.mxu0 %v405
        %407 = vmatprep.subr.mxu0 0.0
        %v408 = vand.u32 %v254, 4294901760
        %v409 = vsub.f32 %v254, %v408
        %v410 = vand.u32 %v409, 4294901760
        %v411 = vsub.f32 %v409, %v410
        %v412 = vand.u32 %v411, 4294901760
        %413 = vmatpush1.msra.mxu0 %v412
        %414 = vmatprep.subr.mxu0 0.0
        %v415 = vand.u32 %v252, 4294901760
        %v416 = vsub.f32 %v252, %v415
        %v417 = vand.u32 %v416, 4294901760
        %v418 = vsub.f32 %v416, %v417
        %v419 = vand.u32 %v418, 4294901760
        %420 = vmatpush1.msra.mxu0 %v419
        %421 = vmatprep.subr.mxu0 0.0
        %v422 = vand.u32 %v248, 4294901760
        %v423 = vsub.f32 %v248, %v422
        %v424 = vand.u32 %v423, 4294901760
        %v425 = vsub.f32 %v423, %v424
        %v426 = vand.u32 %v425, 4294901760
        %427 = vmatpush1.msra.mxu0 %v426
        %428 = vmatprep.subr.mxu0 0.0
        %v429 = vand.u32 %v247, 4294901760
        %v430 = vsub.f32 %v247, %v429
        %v431 = vand.u32 %v430, 4294901760
        %v432 = vsub.f32 %v430, %v431
        %v433 = vand.u32 %v432, 4294901760
        %434 = vmatpush1.msra.mxu0 %v433
        %435 = vmatprep.subr.mxu0 0.0
        %436 = vmatpush2.msra.mxu0 0.0
        %437 = vmatprep.subr.mxu0 0.0
        %438 = vmatpush2.msra.mxu0 0.0
        %439 = vmatprep.subr.mxu0 0.0
        %440 = vmatpush2.msra.mxu0 0.0
        %441 = vmatprep.subr.mxu0 0.0
        %442 = vmatpush2.msra.mxu0 0.0
        %443 = vmatprep.subr.mxu0 0.0
        %444 = vmatpush2.msra.mxu0 0.0
        %445 = vmatprep.subr.mxu0 0.0
        %446 = vmatpush2.msra.mxu0 0.0
        %447 = vmatprep.subr.mxu0 0.0
        %448 = vmatpush2.msra.mxu0 0.0
        %449 = vmatprep.subr.mxu0 0.0
        %450 = vmatpush2.msra.mxu0 0.0
        %451 = vmatprep.subr.mxu0 0.0
        %452 = vmatpush2.msra.mxu0 0.0
        %453 = vmatprep.subr.mxu0 0.0
        %454 = vmatpush2.msra.mxu0 0.0
        %455 = vmatprep.subr.mxu0 0.0
        %456 = vmatpush2.msra.mxu0 0.0
        %457 = vmatprep.subr.mxu0 0.0
        %458 = vmatpush2.msra.mxu0 0.0
        %459 = vmatprep.subr.mxu0 0.0
        %460 = vmatpush2.msra.mxu0 0.0
        %461 = vmatprep.subr.mxu0 0.0
        %462 = vmatpush2.msra.mxu0 0.0
        %463 = vmatprep.subr.mxu0 0.0
        %464 = vmatpush2.msra.mxu0 0.0
        %465 = vmatprep.subr.mxu0 0.0
        %466 = vmatpush2.msra.mxu0 0.0
        %467 = vmatprep.mubr.f32.mxu0 0.0
        %v468 = vand.u32 %v278, 4294901760
        %469 = vmatmul.mubr.f32.gmra.mxu0 %v468
        %v470 = vpop.f32.mrf.mxu0
        %v471 = vadd.f32 %v360, %v470
        %v472 = vpop.f32.mrf.mxu0
        %473 = vdwg.mxu0
        %474 = vmatprep.subr.mxu0 0.0
        %475 = vmatpush1.msra.mxu0 0.0
        %476 = vmatprep.subr.mxu0 0.0
        %477 = vmatpush1.msra.mxu0 0.0
        %478 = vmatprep.subr.mxu0 0.0
        %479 = vmatpush1.msra.mxu0 0.0
        %480 = vmatprep.subr.mxu0 0.0
        %481 = vmatpush1.msra.mxu0 0.0
        %482 = vmatprep.subr.mxu0 0.0
        %483 = vmatpush1.msra.mxu0 0.0
        %484 = vmatprep.subr.mxu0 0.0
        %485 = vmatpush1.msra.mxu0 0.0
        %486 = vmatprep.subr.mxu0 0.0
        %487 = vmatpush1.msra.mxu0 0.0
        %488 = vmatprep.subr.mxu0 0.0
        %489 = vmatpush1.msra.mxu0 0.0
        %490 = vmatprep.subr.mxu0 0.0
        %v491 = vand.u32 %v266, 4294901760
        %v492 = vsub.f32 %v266, %v491
        %493 = vmatpush1.msra.mxu0 %v492
        %494 = vmatprep.subr.mxu0 0.0
        %v495 = vand.u32 %v264, 4294901760
        %v496 = vsub.f32 %v264, %v495
        %497 = vmatpush1.msra.mxu0 %v496
        %498 = vmatprep.subr.mxu0 0.0
        %v499 = vand.u32 %v260, 4294901760
        %v500 = vsub.f32 %v260, %v499
        %501 = vmatpush1.msra.mxu0 %v500
        %502 = vmatprep.subr.mxu0 0.0
        %v503 = vand.u32 %v258, 4294901760
        %v504 = vsub.f32 %v258, %v503
        %505 = vmatpush1.msra.mxu0 %v504
        %506 = vmatprep.subr.mxu0 0.0
        %v507 = vand.u32 %v254, 4294901760
        %v508 = vsub.f32 %v254, %v507
        %509 = vmatpush1.msra.mxu0 %v508
        %510 = vmatprep.subr.mxu0 0.0
        %v511 = vand.u32 %v252, 4294901760
        %v512 = vsub.f32 %v252, %v511
        %513 = vmatpush1.msra.mxu0 %v512
        %514 = vmatprep.subr.mxu0 0.0
        %v515 = vand.u32 %v248, 4294901760
        %v516 = vsub.f32 %v248, %v515
        %517 = vmatpush1.msra.mxu0 %v516
        %518 = vmatprep.subr.mxu0 0.0
        %v519 = vand.u32 %v247, 4294901760
        %v520 = vsub.f32 %v247, %v519
        %521 = vmatpush1.msra.mxu0 %v520
        %522 = vmatprep.subr.mxu0 0.0
        %523 = vmatpush2.msra.mxu0 0.0
        %524 = vmatprep.subr.mxu0 0.0
        %525 = vmatpush2.msra.mxu0 0.0
        %526 = vmatprep.subr.mxu0 0.0
        %527 = vmatpush2.msra.mxu0 0.0
        %528 = vmatprep.subr.mxu0 0.0
        %529 = vmatpush2.msra.mxu0 0.0
        %530 = vmatprep.subr.mxu0 0.0
        %531 = vmatpush2.msra.mxu0 0.0
        %532 = vmatprep.subr.mxu0 0.0
        %533 = vmatpush2.msra.mxu0 0.0
        %534 = vmatprep.subr.mxu0 0.0
        %535 = vmatpush2.msra.mxu0 0.0
        %536 = vmatprep.subr.mxu0 0.0
        %537 = vmatpush2.msra.mxu0 0.0
        %538 = vmatprep.subr.mxu0 0.0
        %539 = vmatpush2.msra.mxu0 0.0
        %540 = vmatprep.subr.mxu0 0.0
        %541 = vmatpush2.msra.mxu0 0.0
        %542 = vmatprep.subr.mxu0 0.0
        %543 = vmatpush2.msra.mxu0 0.0
        %544 = vmatprep.subr.mxu0 0.0
        %545 = vmatpush2.msra.mxu0 0.0
        %546 = vmatprep.subr.mxu0 0.0
        %547 = vmatpush2.msra.mxu0 0.0
        %548 = vmatprep.subr.mxu0 0.0
        %549 = vmatpush2.msra.mxu0 0.0
        %550 = vmatprep.subr.mxu0 0.0
        %551 = vmatpush2.msra.mxu0 0.0
        %552 = vmatprep.subr.mxu0 0.0
        %553 = vmatpush2.msra.mxu0 0.0
        %554 = vmatprep.mubr.f32.mxu0 0.0
        %v555 = vand.u32 %v278, 4294901760
        %v556 = vsub.f32 %v278, %v555
        %557 = vmatmul.mubr.f32.gmra.mxu0 %v556
        %v558 = vpop.f32.mrf.mxu0
        %v559 = vadd.f32 %v471, %v558
        %v560 = vpop.f32.mrf.mxu0
        %561 = vdwg.mxu0
        %562 = vmatprep.subr.mxu0 0.0
        %563 = vmatpush1.msra.mxu0 0.0
        %564 = vmatprep.subr.mxu0 0.0
        %565 = vmatpush1.msra.mxu0 0.0
        %566 = vmatprep.subr.mxu0 0.0
        %567 = vmatpush1.msra.mxu0 0.0
        %568 = vmatprep.subr.mxu0 0.0
        %569 = vmatpush1.msra.mxu0 0.0
        %570 = vmatprep.subr.mxu0 0.0
        %571 = vmatpush1.msra.mxu0 0.0
        %572 = vmatprep.subr.mxu0 0.0
        %573 = vmatpush1.msra.mxu0 0.0
        %574 = vmatprep.subr.mxu0 0.0
        %575 = vmatpush1.msra.mxu0 0.0
        %576 = vmatprep.subr.mxu0 0.0
        %577 = vmatpush1.msra.mxu0 0.0
        %578 = vmatprep.subr.mxu0 0.0
        %v579 = vand.u32 %v266, 4294901760
        %580 = vmatpush1.msra.mxu0 %v579
        %581 = vmatprep.subr.mxu0 0.0
        %v582 = vand.u32 %v264, 4294901760
        %583 = vmatpush1.msra.mxu0 %v582
        %584 = vmatprep.subr.mxu0 0.0
        %v585 = vand.u32 %v260, 4294901760
        %586 = vmatpush1.msra.mxu0 %v585
        %587 = vmatprep.subr.mxu0 0.0
        %v588 = vand.u32 %v258, 4294901760
        %589 = vmatpush1.msra.mxu0 %v588
        %590 = vmatprep.subr.mxu0 0.0
        %v591 = vand.u32 %v254, 4294901760
        %592 = vmatpush1.msra.mxu0 %v591
        %593 = vmatprep.subr.mxu0 0.0
        %v594 = vand.u32 %v252, 4294901760
        %595 = vmatpush1.msra.mxu0 %v594
        %596 = vmatprep.subr.mxu0 0.0
        %v597 = vand.u32 %v248, 4294901760
        %598 = vmatpush1.msra.mxu0 %v597
        %599 = vmatprep.subr.mxu0 0.0
        %v600 = vand.u32 %v247, 4294901760
        %601 = vmatpush1.msra.mxu0 %v600
        %602 = vmatprep.subr.mxu0 0.0
        %603 = vmatpush2.msra.mxu0 0.0
        %604 = vmatprep.subr.mxu0 0.0
        %605 = vmatpush2.msra.mxu0 0.0
        %606 = vmatprep.subr.mxu0 0.0
        %607 = vmatpush2.msra.mxu0 0.0
        %608 = vmatprep.subr.mxu0 0.0
        %609 = vmatpush2.msra.mxu0 0.0
        %610 = vmatprep.subr.mxu0 0.0
        %611 = vmatpush2.msra.mxu0 0.0
        %612 = vmatprep.subr.mxu0 0.0
        %613 = vmatpush2.msra.mxu0 0.0
        %614 = vmatprep.subr.mxu0 0.0
        %615 = vmatpush2.msra.mxu0 0.0
        %616 = vmatprep.subr.mxu0 0.0
        %617 = vmatpush2.msra.mxu0 0.0
        %618 = vmatprep.subr.mxu0 0.0
        %619 = vmatpush2.msra.mxu0 0.0
        %620 = vmatprep.subr.mxu0 0.0
        %621 = vmatpush2.msra.mxu0 0.0
        %622 = vmatprep.subr.mxu0 0.0
        %623 = vmatpush2.msra.mxu0 0.0
        %624 = vmatprep.subr.mxu0 0.0
        %625 = vmatpush2.msra.mxu0 0.0
        %626 = vmatprep.subr.mxu0 0.0
        %627 = vmatpush2.msra.mxu0 0.0
        %628 = vmatprep.subr.mxu0 0.0
        %629 = vmatpush2.msra.mxu0 0.0
        %630 = vmatprep.subr.mxu0 0.0
        %631 = vmatpush2.msra.mxu0 0.0
        %632 = vmatprep.subr.mxu0 0.0
        %633 = vmatpush2.msra.mxu0 0.0
        %634 = vmatprep.mubr.f32.mxu0 0.0
        %v635 = vand.u32 %v278, 4294901760
        %v636 = vsub.f32 %v278, %v635
        %v637 = vand.u32 %v636, 4294901760
        %638 = vmatmul.mubr.f32.gmra.mxu0 %v637
        %v639 = vpop.f32.mrf.mxu0
        %v640 = vadd.f32 %v559, %v639
        %v641 = vpop.f32.mrf.mxu0
        %642 = vdwg.mxu0
        %643 = vmatprep.subr.mxu0 0.0
        %644 = vmatpush1.msra.mxu0 0.0
        %645 = vmatprep.subr.mxu0 0.0
        %646 = vmatpush1.msra.mxu0 0.0
        %647 = vmatprep.subr.mxu0 0.0
        %648 = vmatpush1.msra.mxu0 0.0
        %649 = vmatprep.subr.mxu0 0.0
        %650 = vmatpush1.msra.mxu0 0.0
        %651 = vmatprep.subr.mxu0 0.0
        %652 = vmatpush1.msra.mxu0 0.0
        %653 = vmatprep.subr.mxu0 0.0
        %654 = vmatpush1.msra.mxu0 0.0
        %655 = vmatprep.subr.mxu0 0.0
        %656 = vmatpush1.msra.mxu0 0.0
        %657 = vmatprep.subr.mxu0 0.0
        %658 = vmatpush1.msra.mxu0 0.0
        %659 = vmatprep.subr.mxu0 0.0
        %v660 = vand.u32 %v266, 4294901760
        %v661 = vsub.f32 %v266, %v660
        %v662 = vand.u32 %v661, 4294901760
        %663 = vmatpush1.msra.mxu0 %v662
        %664 = vmatprep.subr.mxu0 0.0
        %v665 = vand.u32 %v264, 4294901760
        %v666 = vsub.f32 %v264, %v665
        %v667 = vand.u32 %v666, 4294901760
        %668 = vmatpush1.msra.mxu0 %v667
        %669 = vmatprep.subr.mxu0 0.0
        %v670 = vand.u32 %v260, 4294901760
        %v671 = vsub.f32 %v260, %v670
        %v672 = vand.u32 %v671, 4294901760
        %673 = vmatpush1.msra.mxu0 %v672
        %674 = vmatprep.subr.mxu0 0.0
        %v675 = vand.u32 %v258, 4294901760
        %v676 = vsub.f32 %v258, %v675
        %v677 = vand.u32 %v676, 4294901760
        %678 = vmatpush1.msra.mxu0 %v677
        %679 = vmatprep.subr.mxu0 0.0
        %v680 = vand.u32 %v254, 4294901760
        %v681 = vsub.f32 %v254, %v680
        %v682 = vand.u32 %v681, 4294901760
        %683 = vmatpush1.msra.mxu0 %v682
        %684 = vmatprep.subr.mxu0 0.0
        %v685 = vand.u32 %v252, 4294901760
        %v686 = vsub.f32 %v252, %v685
        %v687 = vand.u32 %v686, 4294901760
        %688 = vmatpush1.msra.mxu0 %v687
        %689 = vmatprep.subr.mxu0 0.0
        %v690 = vand.u32 %v248, 4294901760
        %v691 = vsub.f32 %v248, %v690
        %v692 = vand.u32 %v691, 4294901760
        %693 = vmatpush1.msra.mxu0 %v692
        %694 = vmatprep.subr.mxu0 0.0
        %v695 = vand.u32 %v247, 4294901760
        %v696 = vsub.f32 %v247, %v695
        %v697 = vand.u32 %v696, 4294901760
        %698 = vmatpush1.msra.mxu0 %v697
        %699 = vmatprep.subr.mxu0 0.0
        %700 = vmatpush2.msra.mxu0 0.0
        %701 = vmatprep.subr.mxu0 0.0
        %702 = vmatpush2.msra.mxu0 0.0
        %703 = vmatprep.subr.mxu0 0.0
        %704 = vmatpush2.msra.mxu0 0.0
        %705 = vmatprep.subr.mxu0 0.0
        %706 = vmatpush2.msra.mxu0 0.0
        %707 = vmatprep.subr.mxu0 0.0
        %708 = vmatpush2.msra.mxu0 0.0
        %709 = vmatprep.subr.mxu0 0.0
        %710 = vmatpush2.msra.mxu0 0.0
        %711 = vmatprep.subr.mxu0 0.0
        %712 = vmatpush2.msra.mxu0 0.0
        %713 = vmatprep.subr.mxu0 0.0
        %714 = vmatpush2.msra.mxu0 0.0
        %715 = vmatprep.subr.mxu0 0.0
        %716 = vmatpush2.msra.mxu0 0.0
        %717 = vmatprep.subr.mxu0 0.0
        %718 = vmatpush2.msra.mxu0 0.0
        %719 = vmatprep.subr.mxu0 0.0
        %720 = vmatpush2.msra.mxu0 0.0
        %721 = vmatprep.subr.mxu0 0.0
        %722 = vmatpush2.msra.mxu0 0.0
        %723 = vmatprep.subr.mxu0 0.0
        %724 = vmatpush2.msra.mxu0 0.0
        %725 = vmatprep.subr.mxu0 0.0
        %726 = vmatpush2.msra.mxu0 0.0
        %727 = vmatprep.subr.mxu0 0.0
        %728 = vmatpush2.msra.mxu0 0.0
        %729 = vmatprep.subr.mxu0 0.0
        %730 = vmatpush2.msra.mxu0 0.0
        %731 = vmatprep.mubr.f32.mxu0 0.0
        %v732 = vand.u32 %v278, 4294901760
        %733 = vmatmul.mubr.f32.gmra.mxu0 %v732
        %v734 = vpop.f32.mrf.mxu0
        %v735 = vadd.f32 %v640, %v734
        %v736 = vpop.f32.mrf.mxu0
        %737 = vdwg.mxu0
        %738 = vmatprep.subr.mxu0 0.0
        %739 = vmatpush1.msra.mxu0 0.0
        %740 = vmatprep.subr.mxu0 0.0
        %741 = vmatpush1.msra.mxu0 0.0
        %742 = vmatprep.subr.mxu0 0.0
        %743 = vmatpush1.msra.mxu0 0.0
        %744 = vmatprep.subr.mxu0 0.0
        %745 = vmatpush1.msra.mxu0 0.0
        %746 = vmatprep.subr.mxu0 0.0
        %747 = vmatpush1.msra.mxu0 0.0
        %748 = vmatprep.subr.mxu0 0.0
        %749 = vmatpush1.msra.mxu0 0.0
        %750 = vmatprep.subr.mxu0 0.0
        %751 = vmatpush1.msra.mxu0 0.0
        %752 = vmatprep.subr.mxu0 0.0
        %753 = vmatpush1.msra.mxu0 0.0
        %754 = vmatprep.subr.mxu0 0.0
        %v755 = vand.u32 %v266, 4294901760
        %756 = vmatpush1.msra.mxu0 %v755
        %757 = vmatprep.subr.mxu0 0.0
        %v758 = vand.u32 %v264, 4294901760
        %759 = vmatpush1.msra.mxu0 %v758
        %760 = vmatprep.subr.mxu0 0.0
        %v761 = vand.u32 %v260, 4294901760
        %762 = vmatpush1.msra.mxu0 %v761
        %763 = vmatprep.subr.mxu0 0.0
        %v764 = vand.u32 %v258, 4294901760
        %765 = vmatpush1.msra.mxu0 %v764
        %766 = vmatprep.subr.mxu0 0.0
        %v767 = vand.u32 %v254, 4294901760
        %768 = vmatpush1.msra.mxu0 %v767
        %769 = vmatprep.subr.mxu0 0.0
        %v770 = vand.u32 %v252, 4294901760
        %771 = vmatpush1.msra.mxu0 %v770
        %772 = vmatprep.subr.mxu0 0.0
        %v773 = vand.u32 %v248, 4294901760
        %774 = vmatpush1.msra.mxu0 %v773
        %775 = vmatprep.subr.mxu0 0.0
        %v776 = vand.u32 %v247, 4294901760
        %777 = vmatpush1.msra.mxu0 %v776
        %778 = vmatprep.subr.mxu0 0.0
        %779 = vmatpush2.msra.mxu0 0.0
        %780 = vmatprep.subr.mxu0 0.0
        %781 = vmatpush2.msra.mxu0 0.0
        %782 = vmatprep.subr.mxu0 0.0
        %783 = vmatpush2.msra.mxu0 0.0
        %784 = vmatprep.subr.mxu0 0.0
        %785 = vmatpush2.msra.mxu0 0.0
        %786 = vmatprep.subr.mxu0 0.0
        %787 = vmatpush2.msra.mxu0 0.0
        %788 = vmatprep.subr.mxu0 0.0
        %789 = vmatpush2.msra.mxu0 0.0
        %790 = vmatprep.subr.mxu0 0.0
        %791 = vmatpush2.msra.mxu0 0.0
        %792 = vmatprep.subr.mxu0 0.0
        %793 = vmatpush2.msra.mxu0 0.0
        %794 = vmatprep.subr.mxu0 0.0
        %795 = vmatpush2.msra.mxu0 0.0
        %796 = vmatprep.subr.mxu0 0.0
        %797 = vmatpush2.msra.mxu0 0.0
        %798 = vmatprep.subr.mxu0 0.0
        %799 = vmatpush2.msra.mxu0 0.0
        %800 = vmatprep.subr.mxu0 0.0
        %801 = vmatpush2.msra.mxu0 0.0
        %802 = vmatprep.subr.mxu0 0.0
        %803 = vmatpush2.msra.mxu0 0.0
        %804 = vmatprep.subr.mxu0 0.0
        %805 = vmatpush2.msra.mxu0 0.0
        %806 = vmatprep.subr.mxu0 0.0
        %807 = vmatpush2.msra.mxu0 0.0
        %808 = vmatprep.subr.mxu0 0.0
        %809 = vmatpush2.msra.mxu0 0.0
        %810 = vmatprep.mubr.f32.mxu0 0.0
        %v811 = vand.u32 %v278, 4294901760
        %812 = vmatmul.mubr.f32.gmra.mxu0 %v811
        %v813 = vpop.f32.mrf.mxu0
        %v814 = vadd.f32 %v735, %v813
        %v815 = vpop.f32.mrf.mxu0
        %816 = vdwg.mxu0
        %vm817 = vcmask 580608
        %818 = vst.msk [vmem:[#allocation2] sm:$0xff] %vm817, %v814
      $region40: #{conv_up.1} parent=35 // pred_fallthru
        _
      %v819 = vld [vmem:[#allocation2] sm:$0xff]
      %v820 = vld [vmem:[%s231] sm:$0xff]
      %v821 = vld [vmem:[%s231 + $0x8] sm:$0xff]
      %v822 = vld [vmem:[%s231 + $0x10] sm:$0xff]
      %v823 = vld [vmem:[%s231 + $0x18] sm:$0xff]
      %v824 = vld [vmem:[%s231 + $0x20] sm:$0xff]
      %v825 = vld [vmem:[%s231 + $0x28] sm:$0xff]
      %v826 = vld [vmem:[%s231 + $0x30] sm:$0xff]
      %v827 = vld [vmem:[%s231 + $0x38] sm:$0xff]
      %v828 = vld [vmem:[%s231 + $0x40] sm:$0xff]
      %v829 = vld [vmem:[%s231 + $0x48] sm:$0xff]
      %v830 = vld [vmem:[%s231 + $0x50] sm:$0xff]
      %v831 = vld [vmem:[%s231 + $0x58] sm:$0xff]
      %v832 = vld [vmem:[%s231 + $0x60] sm:$0xff]
      %v833 = vld [vmem:[%s231 + $0x68] sm:$0xff]
      %v834 = vld [vmem:[%s231 + $0x70] sm:$0xff]
      %v835 = vld [vmem:[%s231 + $0x78] sm:$0xff]
      %v836 = vld [vmem:[%s231 + $0x80] sm:$0x7f]
      %v837 = vld [vmem:[%s231 + $0x88] sm:$0x7f]
      %vm838 = vcmask 580608
      %v840 = vsel %vm838, %v819, 0
      %vm842 = vcmask 1046528
      %v844 = vsel %vm842, %v836, 0
      %v847 = vsel %vm842, %v837, 0
      %849 = vmatprep.subr.mxu0 0.0
      %850 = vmatpush1.msra.mxu0 0.0
      %851 = vmatprep.subr.mxu0 0.0
      %852 = vmatpush1.msra.mxu0 0.0
      %853 = vmatprep.subr.mxu0 0.0
      %854 = vmatpush1.msra.mxu0 0.0
      %855 = vmatprep.subr.mxu0 0.0
      %856 = vmatpush1.msra.mxu0 0.0
      %857 = vmatprep.subr.mxu0 0.0
      %858 = vmatpush1.msra.mxu0 0.0
      %859 = vmatprep.subr.mxu0 0.0
      %860 = vmatpush1.msra.mxu0 0.0
      %861 = vmatprep.subr.mxu0 0.0
      %862 = vmatpush1.msra.mxu0 0.0
      %v863 = vand.u32 %v847, 4294901760
      %864 = vmatprep.subr.mxu0 %v863
      %v865 = vand.u32 %v844, 4294901760
      %866 = vmatpush1.msra.mxu0 %v865
      %v867 = vand.u32 %v835, 4294901760
      %868 = vmatprep.subr.mxu0 %v867
      %v869 = vand.u32 %v834, 4294901760
      %870 = vmatpush1.msra.mxu0 %v869
      %v871 = vand.u32 %v833, 4294901760
      %872 = vmatprep.subr.mxu0 %v871
      %v873 = vand.u32 %v832, 4294901760
      %874 = vmatpush1.msra.mxu0 %v873
      %v875 = vand.u32 %v831, 4294901760
      %876 = vmatprep.subr.mxu0 %v875
      %v877 = vand.u32 %v830, 4294901760
      %878 = vmatpush1.msra.mxu0 %v877
      %v879 = vand.u32 %v829, 4294901760
      %880 = vmatprep.subr.mxu0 %v879
      %v881 = vand.u32 %v828, 4294901760
      %882 = vmatpush1.msra.mxu0 %v881
      %v883 = vand.u32 %v827, 4294901760
      %884 = vmatprep.subr.mxu0 %v883
      %v885 = vand.u32 %v826, 4294901760
      %886 = vmatpush1.msra.mxu0 %v885
      %v887 = vand.u32 %v825, 4294901760
      %888 = vmatprep.subr.mxu0 %v887
      %v889 = vand.u32 %v824, 4294901760
      %890 = vmatpush1.msra.mxu0 %v889
      %v891 = vand.u32 %v823, 4294901760
      %892 = vmatprep.subr.mxu0 %v891
      %v893 = vand.u32 %v822, 4294901760
      %894 = vmatpush1.msra.mxu0 %v893
      %v895 = vand.u32 %v821, 4294901760
      %896 = vmatprep.subr.mxu0 %v895
      %v897 = vand.u32 %v820, 4294901760
      %898 = vmatpush1.msra.mxu0 %v897
      %899 = vmatprep.subr.mxu0 0.0
      %900 = vmatpush2.msra.mxu0 0.0
      %901 = vmatprep.subr.mxu0 0.0
      %902 = vmatpush2.msra.mxu0 0.0
      %903 = vmatprep.subr.mxu0 0.0
      %904 = vmatpush2.msra.mxu0 0.0
      %905 = vmatprep.subr.mxu0 0.0
      %906 = vmatpush2.msra.mxu0 0.0
      %907 = vmatprep.subr.mxu0 0.0
      %908 = vmatpush2.msra.mxu0 0.0
      %909 = vmatprep.subr.mxu0 0.0
      %910 = vmatpush2.msra.mxu0 0.0
      %911 = vmatprep.subr.mxu0 0.0
      %912 = vmatpush2.msra.mxu0 0.0
      %913 = vmatprep.subr.mxu0 0.0
      %914 = vmatpush2.msra.mxu0 0.0
      %915 = vmatprep.subr.mxu0 0.0
      %916 = vmatpush2.msra.mxu0 0.0
      %917 = vmatprep.subr.mxu0 0.0
      %918 = vmatpush2.msra.mxu0 0.0
      %919 = vmatprep.subr.mxu0 0.0
      %920 = vmatpush2.msra.mxu0 0.0
      %921 = vmatprep.subr.mxu0 0.0
      %922 = vmatpush2.msra.mxu0 0.0
      %923 = vmatprep.subr.mxu0 0.0
      %924 = vmatpush2.msra.mxu0 0.0
      %925 = vmatprep.subr.mxu0 0.0
      %926 = vmatpush2.msra.mxu0 0.0
      %927 = vmatprep.subr.mxu0 0.0
      %928 = vmatpush2.msra.mxu0 0.0
      %929 = vmatprep.subr.mxu0 0.0
      %930 = vmatpush2.msra.mxu0 0.0
      %931 = vmatprep.mubr.f32.mxu0 0.0
      %v932 = vand.u32 %v840, 4294901760
      %v933 = vsub.f32 %v840, %v932
      %v934 = vand.u32 %v933, 4294901760
      %v935 = vsub.f32 %v933, %v934
      %v936 = vand.u32 %v935, 4294901760
      %937 = vmatmul.mubr.f32.gmra.mxu0 %v936
      %v938 = vpop.f32.mrf.mxu0
      %v939 = vadd.f32 0.0, %v938
      %v940 = vpop.f32.mrf.mxu0
      %v941 = vadd.f32 0.0, %v940
      %942 = vdwg.mxu0
      %943 = vmatprep.subr.mxu0 0.0
      %944 = vmatpush1.msra.mxu0 0.0
      %945 = vmatprep.subr.mxu0 0.0
      %946 = vmatpush1.msra.mxu0 0.0
      %947 = vmatprep.subr.mxu0 0.0
      %948 = vmatpush1.msra.mxu0 0.0
      %949 = vmatprep.subr.mxu0 0.0
      %950 = vmatpush1.msra.mxu0 0.0
      %951 = vmatprep.subr.mxu0 0.0
      %952 = vmatpush1.msra.mxu0 0.0
      %953 = vmatprep.subr.mxu0 0.0
      %954 = vmatpush1.msra.mxu0 0.0
      %955 = vmatprep.subr.mxu0 0.0
      %956 = vmatpush1.msra.mxu0 0.0
      %v957 = vand.u32 %v847, 4294901760
      %v958 = vsub.f32 %v847, %v957
      %v959 = vand.u32 %v958, 4294901760
      %v960 = vsub.f32 %v958, %v959
      %v961 = vand.u32 %v960, 4294901760
      %962 = vmatprep.subr.mxu0 %v961
      %v963 = vand.u32 %v844, 4294901760
      %v964 = vsub.f32 %v844, %v963
      %v965 = vand.u32 %v964, 4294901760
      %v966 = vsub.f32 %v964, %v965
      %v967 = vand.u32 %v966, 4294901760
      %968 = vmatpush1.msra.mxu0 %v967
      %v969 = vand.u32 %v835, 4294901760
      %v970 = vsub.f32 %v835, %v969
      %v971 = vand.u32 %v970, 4294901760
      %v972 = vsub.f32 %v970, %v971
      %v973 = vand.u32 %v972, 4294901760
      %974 = vmatprep.subr.mxu0 %v973
      %v975 = vand.u32 %v834, 4294901760
      %v976 = vsub.f32 %v834, %v975
      %v977 = vand.u32 %v976, 4294901760
      %v978 = vsub.f32 %v976, %v977
      %v979 = vand.u32 %v978, 4294901760
      %980 = vmatpush1.msra.mxu0 %v979
      %v981 = vand.u32 %v833, 4294901760
      %v982 = vsub.f32 %v833, %v981
      %v983 = vand.u32 %v982, 4294901760
      %v984 = vsub.f32 %v982, %v983
      %v985 = vand.u32 %v984, 4294901760
      %986 = vmatprep.subr.mxu0 %v985
      %v987 = vand.u32 %v832, 4294901760
      %v988 = vsub.f32 %v832, %v987
      %v989 = vand.u32 %v988, 4294901760
      %v990 = vsub.f32 %v988, %v989
      %v991 = vand.u32 %v990, 4294901760
      %992 = vmatpush1.msra.mxu0 %v991
      %v993 = vand.u32 %v831, 4294901760
      %v994 = vsub.f32 %v831, %v993
      %v995 = vand.u32 %v994, 4294901760
      %v996 = vsub.f32 %v994, %v995
      %v997 = vand.u32 %v996, 4294901760
      %998 = vmatprep.subr.mxu0 %v997
      %v999 = vand.u32 %v830, 4294901760
      %v1000 = vsub.f32 %v830, %v999
      %v1001 = vand.u32 %v1000, 4294901760
      %v1002 = vsub.f32 %v1000, %v1001
      %v1003 = vand.u32 %v1002, 4294901760
      %1004 = vmatpush1.msra.mxu0 %v1003
      %v1005 = vand.u32 %v829, 4294901760
      %v1006 = vsub.f32 %v829, %v1005
      %v1007 = vand.u32 %v1006, 4294901760
      %v1008 = vsub.f32 %v1006, %v1007
      %v1009 = vand.u32 %v1008, 4294901760
      %1010 = vmatprep.subr.mxu0 %v1009
      %v1011 = vand.u32 %v828, 4294901760
      %v1012 = vsub.f32 %v828, %v1011
      %v1013 = vand.u32 %v1012, 4294901760
      %v1014 = vsub.f32 %v1012, %v1013
      %v1015 = vand.u32 %v1014, 4294901760
      %1016 = vmatpush1.msra.mxu0 %v1015
      %v1017 = vand.u32 %v827, 4294901760
      %v1018 = vsub.f32 %v827, %v1017
      %v1019 = vand.u32 %v1018, 4294901760
      %v1020 = vsub.f32 %v1018, %v1019
      %v1021 = vand.u32 %v1020, 4294901760
      %1022 = vmatprep.subr.mxu0 %v1021
      %v1023 = vand.u32 %v826, 4294901760
      %v1024 = vsub.f32 %v826, %v1023
      %v1025 = vand.u32 %v1024, 4294901760
      %v1026 = vsub.f32 %v1024, %v1025
      %v1027 = vand.u32 %v1026, 4294901760
      %1028 = vmatpush1.msra.mxu0 %v1027
      %v1029 = vand.u32 %v825, 4294901760
      %v1030 = vsub.f32 %v825, %v1029
      %v1031 = vand.u32 %v1030, 4294901760
      %v1032 = vsub.f32 %v1030, %v1031
      %v1033 = vand.u32 %v1032, 4294901760
      %1034 = vmatprep.subr.mxu0 %v1033
      %v1035 = vand.u32 %v824, 4294901760
      %v1036 = vsub.f32 %v824, %v1035
      %v1037 = vand.u32 %v1036, 4294901760
      %v1038 = vsub.f32 %v1036, %v1037
      %v1039 = vand.u32 %v1038, 4294901760
      %1040 = vmatpush1.msra.mxu0 %v1039
      %v1041 = vand.u32 %v823, 4294901760
      %v1042 = vsub.f32 %v823, %v1041
      %v1043 = vand.u32 %v1042, 4294901760
      %v1044 = vsub.f32 %v1042, %v1043
      %v1045 = vand.u32 %v1044, 4294901760
      %1046 = vmatprep.subr.mxu0 %v1045
      %v1047 = vand.u32 %v822, 4294901760
      %v1048 = vsub.f32 %v822, %v1047
      %v1049 = vand.u32 %v1048, 4294901760
      %v1050 = vsub.f32 %v1048, %v1049
      %v1051 = vand.u32 %v1050, 4294901760
      %1052 = vmatpush1.msra.mxu0 %v1051
      %v1053 = vand.u32 %v821, 4294901760
      %v1054 = vsub.f32 %v821, %v1053
      %v1055 = vand.u32 %v1054, 4294901760
      %v1056 = vsub.f32 %v1054, %v1055
      %v1057 = vand.u32 %v1056, 4294901760
      %1058 = vmatprep.subr.mxu0 %v1057
      %v1059 = vand.u32 %v820, 4294901760
      %v1060 = vsub.f32 %v820, %v1059
      %v1061 = vand.u32 %v1060, 4294901760
      %v1062 = vsub.f32 %v1060, %v1061
      %v1063 = vand.u32 %v1062, 4294901760
      %1064 = vmatpush1.msra.mxu0 %v1063
      %1065 = vmatprep.subr.mxu0 0.0
      %1066 = vmatpush2.msra.mxu0 0.0
      %1067 = vmatprep.subr.mxu0 0.0
      %1068 = vmatpush2.msra.mxu0 0.0
      %1069 = vmatprep.subr.mxu0 0.0
      %1070 = vmatpush2.msra.mxu0 0.0
      %1071 = vmatprep.subr.mxu0 0.0
      %1072 = vmatpush2.msra.mxu0 0.0
      %1073 = vmatprep.subr.mxu0 0.0
      %1074 = vmatpush2.msra.mxu0 0.0
      %1075 = vmatprep.subr.mxu0 0.0
      %1076 = vmatpush2.msra.mxu0 0.0
      %1077 = vmatprep.subr.mxu0 0.0
      %1078 = vmatpush2.msra.mxu0 0.0
      %1079 = vmatprep.subr.mxu0 0.0
      %1080 = vmatpush2.msra.mxu0 0.0
      %1081 = vmatprep.subr.mxu0 0.0
      %1082 = vmatpush2.msra.mxu0 0.0
      %1083 = vmatprep.subr.mxu0 0.0
      %1084 = vmatpush2.msra.mxu0 0.0
      %1085 = vmatprep.subr.mxu0 0.0
      %1086 = vmatpush2.msra.mxu0 0.0
      %1087 = vmatprep.subr.mxu0 0.0
      %1088 = vmatpush2.msra.mxu0 0.0
      %1089 = vmatprep.subr.mxu0 0.0
      %1090 = vmatpush2.msra.mxu0 0.0
      %1091 = vmatprep.subr.mxu0 0.0
      %1092 = vmatpush2.msra.mxu0 0.0
      %1093 = vmatprep.subr.mxu0 0.0
      %1094 = vmatpush2.msra.mxu0 0.0
      %1095 = vmatprep.subr.mxu0 0.0
      %1096 = vmatpush2.msra.mxu0 0.0
      %1097 = vmatprep.mubr.f32.mxu0 0.0
      %v1098 = vand.u32 %v840, 4294901760
      %1099 = vmatmul.mubr.f32.gmra.mxu0 %v1098
      %v1100 = vpop.f32.mrf.mxu0
      %v1101 = vadd.f32 %v939, %v1100
      %v1102 = vpop.f32.mrf.mxu0
      %v1103 = vadd.f32 %v941, %v1102
      %1104 = vdwg.mxu0
      %1105 = vmatprep.subr.mxu0 0.0
      %1106 = vmatpush1.msra.mxu0 0.0
      %1107 = vmatprep.subr.mxu0 0.0
      %1108 = vmatpush1.msra.mxu0 0.0
      %1109 = vmatprep.subr.mxu0 0.0
      %1110 = vmatpush1.msra.mxu0 0.0
      %1111 = vmatprep.subr.mxu0 0.0
      %1112 = vmatpush1.msra.mxu0 0.0
      %1113 = vmatprep.subr.mxu0 0.0
      %1114 = vmatpush1.msra.mxu0 0.0
      %1115 = vmatprep.subr.mxu0 0.0
      %1116 = vmatpush1.msra.mxu0 0.0
      %1117 = vmatprep.subr.mxu0 0.0
      %1118 = vmatpush1.msra.mxu0 0.0
      %v1119 = vand.u32 %v847, 4294901760
      %v1120 = vsub.f32 %v847, %v1119
      %1121 = vmatprep.subr.mxu0 %v1120
      %v1122 = vand.u32 %v844, 4294901760
      %v1123 = vsub.f32 %v844, %v1122
      %1124 = vmatpush1.msra.mxu0 %v1123
      %v1125 = vand.u32 %v835, 4294901760
      %v1126 = vsub.f32 %v835, %v1125
      %1127 = vmatprep.subr.mxu0 %v1126
      %v1128 = vand.u32 %v834, 4294901760
      %v1129 = vsub.f32 %v834, %v1128
      %1130 = vmatpush1.msra.mxu0 %v1129
      %v1131 = vand.u32 %v833, 4294901760
      %v1132 = vsub.f32 %v833, %v1131
      %1133 = vmatprep.subr.mxu0 %v1132
      %v1134 = vand.u32 %v832, 4294901760
      %v1135 = vsub.f32 %v832, %v1134
      %1136 = vmatpush1.msra.mxu0 %v1135
      %v1137 = vand.u32 %v831, 4294901760
      %v1138 = vsub.f32 %v831, %v1137
      %1139 = vmatprep.subr.mxu0 %v1138
      %v1140 = vand.u32 %v830, 4294901760
      %v1141 = vsub.f32 %v830, %v1140
      %1142 = vmatpush1.msra.mxu0 %v1141
      %v1143 = vand.u32 %v829, 4294901760
      %v1144 = vsub.f32 %v829, %v1143
      %1145 = vmatprep.subr.mxu0 %v1144
      %v1146 = vand.u32 %v828, 4294901760
      %v1147 = vsub.f32 %v828, %v1146
      %1148 = vmatpush1.msra.mxu0 %v1147
      %v1149 = vand.u32 %v827, 4294901760
      %v1150 = vsub.f32 %v827, %v1149
      %1151 = vmatprep.subr.mxu0 %v1150
      %v1152 = vand.u32 %v826, 4294901760
      %v1153 = vsub.f32 %v826, %v1152
      %1154 = vmatpush1.msra.mxu0 %v1153
      %v1155 = vand.u32 %v825, 4294901760
      %v1156 = vsub.f32 %v825, %v1155
      %1157 = vmatprep.subr.mxu0 %v1156
      %v1158 = vand.u32 %v824, 4294901760
      %v1159 = vsub.f32 %v824, %v1158
      %1160 = vmatpush1.msra.mxu0 %v1159
      %v1161 = vand.u32 %v823, 4294901760
      %v1162 = vsub.f32 %v823, %v1161
      %1163 = vmatprep.subr.mxu0 %v1162
      %v1164 = vand.u32 %v822, 4294901760
      %v1165 = vsub.f32 %v822, %v1164
      %1166 = vmatpush1.msra.mxu0 %v1165
      %v1167 = vand.u32 %v821, 4294901760
      %v1168 = vsub.f32 %v821, %v1167
      %1169 = vmatprep.subr.mxu0 %v1168
      %v1170 = vand.u32 %v820, 4294901760
      %v1171 = vsub.f32 %v820, %v1170
      %1172 = vmatpush1.msra.mxu0 %v1171
      %1173 = vmatprep.subr.mxu0 0.0
      %1174 = vmatpush2.msra.mxu0 0.0
      %1175 = vmatprep.subr.mxu0 0.0
      %1176 = vmatpush2.msra.mxu0 0.0
      %1177 = vmatprep.subr.mxu0 0.0
      %1178 = vmatpush2.msra.mxu0 0.0
      %1179 = vmatprep.subr.mxu0 0.0
      %1180 = vmatpush2.msra.mxu0 0.0
      %1181 = vmatprep.subr.mxu0 0.0
      %1182 = vmatpush2.msra.mxu0 0.0
      %1183 = vmatprep.subr.mxu0 0.0
      %1184 = vmatpush2.msra.mxu0 0.0
      %1185 = vmatprep.subr.mxu0 0.0
      %1186 = vmatpush2.msra.mxu0 0.0
      %1187 = vmatprep.subr.mxu0 0.0
      %1188 = vmatpush2.msra.mxu0 0.0
      %1189 = vmatprep.subr.mxu0 0.0
      %1190 = vmatpush2.msra.mxu0 0.0
      %1191 = vmatprep.subr.mxu0 0.0
      %1192 = vmatpush2.msra.mxu0 0.0
      %1193 = vmatprep.subr.mxu0 0.0
      %1194 = vmatpush2.msra.mxu0 0.0
      %1195 = vmatprep.subr.mxu0 0.0
      %1196 = vmatpush2.msra.mxu0 0.0
      %1197 = vmatprep.subr.mxu0 0.0
      %1198 = vmatpush2.msra.mxu0 0.0
      %1199 = vmatprep.subr.mxu0 0.0
      %1200 = vmatpush2.msra.mxu0 0.0
      %1201 = vmatprep.subr.mxu0 0.0
      %1202 = vmatpush2.msra.mxu0 0.0
      %1203 = vmatprep.subr.mxu0 0.0
      %1204 = vmatpush2.msra.mxu0 0.0
      %1205 = vmatprep.mubr.f32.mxu0 0.0
      %v1206 = vand.u32 %v840, 4294901760
      %v1207 = vsub.f32 %v840, %v1206
      %1208 = vmatmul.mubr.f32.gmra.mxu0 %v1207
      %v1209 = vpop.f32.mrf.mxu0
      %v1210 = vadd.f32 %v1101, %v1209
      %v1211 = vpop.f32.mrf.mxu0
      %v1212 = vadd.f32 %v1103, %v1211
      %1213 = vdwg.mxu0
      %1214 = vmatprep.subr.mxu0 0.0
      %1215 = vmatpush1.msra.mxu0 0.0
      %1216 = vmatprep.subr.mxu0 0.0
      %1217 = vmatpush1.msra.mxu0 0.0
      %1218 = vmatprep.subr.mxu0 0.0
      %1219 = vmatpush1.msra.mxu0 0.0
      %1220 = vmatprep.subr.mxu0 0.0
      %1221 = vmatpush1.msra.mxu0 0.0
      %1222 = vmatprep.subr.mxu0 0.0
      %1223 = vmatpush1.msra.mxu0 0.0
      %1224 = vmatprep.subr.mxu0 0.0
      %1225 = vmatpush1.msra.mxu0 0.0
      %1226 = vmatprep.subr.mxu0 0.0
      %1227 = vmatpush1.msra.mxu0 0.0
      %v1228 = vand.u32 %v847, 4294901760
      %1229 = vmatprep.subr.mxu0 %v1228
      %v1230 = vand.u32 %v844, 4294901760
      %1231 = vmatpush1.msra.mxu0 %v1230
      %v1232 = vand.u32 %v835, 4294901760
      %1233 = vmatprep.subr.mxu0 %v1232
      %v1234 = vand.u32 %v834, 4294901760
      %1235 = vmatpush1.msra.mxu0 %v1234
      %v1236 = vand.u32 %v833, 4294901760
      %1237 = vmatprep.subr.mxu0 %v1236
      %v1238 = vand.u32 %v832, 4294901760
      %1239 = vmatpush1.msra.mxu0 %v1238
      %v1240 = vand.u32 %v831, 4294901760
      %1241 = vmatprep.subr.mxu0 %v1240
      %v1242 = vand.u32 %v830, 4294901760
      %1243 = vmatpush1.msra.mxu0 %v1242
      %v1244 = vand.u32 %v829, 4294901760
      %1245 = vmatprep.subr.mxu0 %v1244
      %v1246 = vand.u32 %v828, 4294901760
      %1247 = vmatpush1.msra.mxu0 %v1246
      %v1248 = vand.u32 %v827, 4294901760
      %1249 = vmatprep.subr.mxu0 %v1248
      %v1250 = vand.u32 %v826, 4294901760
      %1251 = vmatpush1.msra.mxu0 %v1250
      %v1252 = vand.u32 %v825, 4294901760
      %1253 = vmatprep.subr.mxu0 %v1252
      %v1254 = vand.u32 %v824, 4294901760
      %1255 = vmatpush1.msra.mxu0 %v1254
      %v1256 = vand.u32 %v823, 4294901760
      %1257 = vmatprep.subr.mxu0 %v1256
      %v1258 = vand.u32 %v822, 4294901760
      %1259 = vmatpush1.msra.mxu0 %v1258
      %v1260 = vand.u32 %v821, 4294901760
      %1261 = vmatprep.subr.mxu0 %v1260
      %v1262 = vand.u32 %v820, 4294901760
      %1263 = vmatpush1.msra.mxu0 %v1262
      %1264 = vmatprep.subr.mxu0 0.0
      %1265 = vmatpush2.msra.mxu0 0.0
      %1266 = vmatprep.subr.mxu0 0.0
      %1267 = vmatpush2.msra.mxu0 0.0
      %1268 = vmatprep.subr.mxu0 0.0
      %1269 = vmatpush2.msra.mxu0 0.0
      %1270 = vmatprep.subr.mxu0 0.0
      %1271 = vmatpush2.msra.mxu0 0.0
      %1272 = vmatprep.subr.mxu0 0.0
      %1273 = vmatpush2.msra.mxu0 0.0
      %1274 = vmatprep.subr.mxu0 0.0
      %1275 = vmatpush2.msra.mxu0 0.0
      %1276 = vmatprep.subr.mxu0 0.0
      %1277 = vmatpush2.msra.mxu0 0.0
      %1278 = vmatprep.subr.mxu0 0.0
      %1279 = vmatpush2.msra.mxu0 0.0
      %1280 = vmatprep.subr.mxu0 0.0
      %1281 = vmatpush2.msra.mxu0 0.0
      %1282 = vmatprep.subr.mxu0 0.0
      %1283 = vmatpush2.msra.mxu0 0.0
      %1284 = vmatprep.subr.mxu0 0.0
      %1285 = vmatpush2.msra.mxu0 0.0
      %1286 = vmatprep.subr.mxu0 0.0
      %1287 = vmatpush2.msra.mxu0 0.0
      %1288 = vmatprep.subr.mxu0 0.0
      %1289 = vmatpush2.msra.mxu0 0.0
      %1290 = vmatprep.subr.mxu0 0.0
      %1291 = vmatpush2.msra.mxu0 0.0
      %1292 = vmatprep.subr.mxu0 0.0
      %1293 = vmatpush2.msra.mxu0 0.0
      %1294 = vmatprep.subr.mxu0 0.0
      %1295 = vmatpush2.msra.mxu0 0.0
      %1296 = vmatprep.mubr.f32.mxu0 0.0
      %v1297 = vand.u32 %v840, 4294901760
      %v1298 = vsub.f32 %v840, %v1297
      %v1299 = vand.u32 %v1298, 4294901760
      %1300 = vmatmul.mubr.f32.gmra.mxu0 %v1299
      %v1301 = vpop.f32.mrf.mxu0
      %v1302 = vadd.f32 %v1210, %v1301
      %v1303 = vpop.f32.mrf.mxu0
      %v1304 = vadd.f32 %v1212, %v1303
      %1305 = vdwg.mxu0
      %1306 = vmatprep.subr.mxu0 0.0
      %1307 = vmatpush1.msra.mxu0 0.0
      %1308 = vmatprep.subr.mxu0 0.0
      %1309 = vmatpush1.msra.mxu0 0.0
      %1310 = vmatprep.subr.mxu0 0.0
      %1311 = vmatpush1.msra.mxu0 0.0
      %1312 = vmatprep.subr.mxu0 0.0
      %1313 = vmatpush1.msra.mxu0 0.0
      %1314 = vmatprep.subr.mxu0 0.0
      %1315 = vmatpush1.msra.mxu0 0.0
      %1316 = vmatprep.subr.mxu0 0.0
      %1317 = vmatpush1.msra.mxu0 0.0
      %1318 = vmatprep.subr.mxu0 0.0
      %1319 = vmatpush1.msra.mxu0 0.0
      %v1320 = vand.u32 %v847, 4294901760
      %v1321 = vsub.f32 %v847, %v1320
      %v1322 = vand.u32 %v1321, 4294901760
      %1323 = vmatprep.subr.mxu0 %v1322
      %v1324 = vand.u32 %v844, 4294901760
      %v1325 = vsub.f32 %v844, %v1324
      %v1326 = vand.u32 %v1325, 4294901760
      %1327 = vmatpush1.msra.mxu0 %v1326
      %v1328 = vand.u32 %v835, 4294901760
      %v1329 = vsub.f32 %v835, %v1328
      %v1330 = vand.u32 %v1329, 4294901760
      %1331 = vmatprep.subr.mxu0 %v1330
      %v1332 = vand.u32 %v834, 4294901760
      %v1333 = vsub.f32 %v834, %v1332
      %v1334 = vand.u32 %v1333, 4294901760
      %1335 = vmatpush1.msra.mxu0 %v1334
      %v1336 = vand.u32 %v833, 4294901760
      %v1337 = vsub.f32 %v833, %v1336
      %v1338 = vand.u32 %v1337, 4294901760
      %1339 = vmatprep.subr.mxu0 %v1338
      %v1340 = vand.u32 %v832, 4294901760
      %v1341 = vsub.f32 %v832, %v1340
      %v1342 = vand.u32 %v1341, 4294901760
      %1343 = vmatpush1.msra.mxu0 %v1342
      %v1344 = vand.u32 %v831, 4294901760
      %v1345 = vsub.f32 %v831, %v1344
      %v1346 = vand.u32 %v1345, 4294901760
      %1347 = vmatprep.subr.mxu0 %v1346
      %v1348 = vand.u32 %v830, 4294901760
      %v1349 = vsub.f32 %v830, %v1348
      %v1350 = vand.u32 %v1349, 4294901760
      %1351 = vmatpush1.msra.mxu0 %v1350
      %v1352 = vand.u32 %v829, 4294901760
      %v1353 = vsub.f32 %v829, %v1352
      %v1354 = vand.u32 %v1353, 4294901760
      %1355 = vmatprep.subr.mxu0 %v1354
      %v1356 = vand.u32 %v828, 4294901760
      %v1357 = vsub.f32 %v828, %v1356
      %v1358 = vand.u32 %v1357, 4294901760
      %1359 = vmatpush1.msra.mxu0 %v1358
      %v1360 = vand.u32 %v827, 4294901760
      %v1361 = vsub.f32 %v827, %v1360
      %v1362 = vand.u32 %v1361, 4294901760
      %1363 = vmatprep.subr.mxu0 %v1362
      %v1364 = vand.u32 %v826, 4294901760
      %v1365 = vsub.f32 %v826, %v1364
      %v1366 = vand.u32 %v1365, 4294901760
      %1367 = vmatpush1.msra.mxu0 %v1366
      %v1368 = vand.u32 %v825, 4294901760
      %v1369 = vsub.f32 %v825, %v1368
      %v1370 = vand.u32 %v1369, 4294901760
      %1371 = vmatprep.subr.mxu0 %v1370
      %v1372 = vand.u32 %v824, 4294901760
      %v1373 = vsub.f32 %v824, %v1372
      %v1374 = vand.u32 %v1373, 4294901760
      %1375 = vmatpush1.msra.mxu0 %v1374
      %v1376 = vand.u32 %v823, 4294901760
      %v1377 = vsub.f32 %v823, %v1376
      %v1378 = vand.u32 %v1377, 4294901760
      %1379 = vmatprep.subr.mxu0 %v1378
      %v1380 = vand.u32 %v822, 4294901760
      %v1381 = vsub.f32 %v822, %v1380
      %v1382 = vand.u32 %v1381, 4294901760
      %1383 = vmatpush1.msra.mxu0 %v1382
      %v1384 = vand.u32 %v821, 4294901760
      %v1385 = vsub.f32 %v821, %v1384
      %v1386 = vand.u32 %v1385, 4294901760
      %1387 = vmatprep.subr.mxu0 %v1386
      %v1388 = vand.u32 %v820, 4294901760
      %v1389 = vsub.f32 %v820, %v1388
      %v1390 = vand.u32 %v1389, 4294901760
      %1391 = vmatpush1.msra.mxu0 %v1390
      %1392 = vmatprep.subr.mxu0 0.0
      %1393 = vmatpush2.msra.mxu0 0.0
      %1394 = vmatprep.subr.mxu0 0.0
      %1395 = vmatpush2.msra.mxu0 0.0
      %1396 = vmatprep.subr.mxu0 0.0
      %1397 = vmatpush2.msra.mxu0 0.0
      %1398 = vmatprep.subr.mxu0 0.0
      %1399 = vmatpush2.msra.mxu0 0.0
      %1400 = vmatprep.subr.mxu0 0.0
      %1401 = vmatpush2.msra.mxu0 0.0
      %1402 = vmatprep.subr.mxu0 0.0
      %1403 = vmatpush2.msra.mxu0 0.0
      %1404 = vmatprep.subr.mxu0 0.0
      %1405 = vmatpush2.msra.mxu0 0.0
      %1406 = vmatprep.subr.mxu0 0.0
      %1407 = vmatpush2.msra.mxu0 0.0
      %1408 = vmatprep.subr.mxu0 0.0
      %1409 = vmatpush2.msra.mxu0 0.0
      %1410 = vmatprep.subr.mxu0 0.0
      %1411 = vmatpush2.msra.mxu0 0.0
      %1412 = vmatprep.subr.mxu0 0.0
      %1413 = vmatpush2.msra.mxu0 0.0
      %1414 = vmatprep.subr.mxu0 0.0
      %1415 = vmatpush2.msra.mxu0 0.0
      %1416 = vmatprep.subr.mxu0 0.0
      %1417 = vmatpush2.msra.mxu0 0.0
      %1418 = vmatprep.subr.mxu0 0.0
      %1419 = vmatpush2.msra.mxu0 0.0
      %1420 = vmatprep.subr.mxu0 0.0
      %1421 = vmatpush2.msra.mxu0 0.0
      %1422 = vmatprep.subr.mxu0 0.0
      %1423 = vmatpush2.msra.mxu0 0.0
      %1424 = vmatprep.mubr.f32.mxu0 0.0
      %v1425 = vand.u32 %v840, 4294901760
      %1426 = vmatmul.mubr.f32.gmra.mxu0 %v1425
      %v1427 = vpop.f32.mrf.mxu0
      %v1428 = vadd.f32 %v1302, %v1427
      %v1429 = vpop.f32.mrf.mxu0
      %v1430 = vadd.f32 %v1304, %v1429
      %1431 = vdwg.mxu0
      %1432 = vmatprep.subr.mxu0 0.0
      %1433 = vmatpush1.msra.mxu0 0.0
      %1434 = vmatprep.subr.mxu0 0.0
      %1435 = vmatpush1.msra.mxu0 0.0
      %1436 = vmatprep.subr.mxu0 0.0
      %1437 = vmatpush1.msra.mxu0 0.0
      %1438 = vmatprep.subr.mxu0 0.0
      %1439 = vmatpush1.msra.mxu0 0.0
      %1440 = vmatprep.subr.mxu0 0.0
      %1441 = vmatpush1.msra.mxu0 0.0
      %1442 = vmatprep.subr.mxu0 0.0
      %1443 = vmatpush1.msra.mxu0 0.0
      %1444 = vmatprep.subr.mxu0 0.0
      %1445 = vmatpush1.msra.mxu0 0.0
      %v1446 = vand.u32 %v847, 4294901760
      %1447 = vmatprep.subr.mxu0 %v1446
      %v1448 = vand.u32 %v844, 4294901760
      %1449 = vmatpush1.msra.mxu0 %v1448
      %v1450 = vand.u32 %v835, 4294901760
      %1451 = vmatprep.subr.mxu0 %v1450
      %v1452 = vand.u32 %v834, 4294901760
      %1453 = vmatpush1.msra.mxu0 %v1452
      %v1454 = vand.u32 %v833, 4294901760
      %1455 = vmatprep.subr.mxu0 %v1454
      %v1456 = vand.u32 %v832, 4294901760
      %1457 = vmatpush1.msra.mxu0 %v1456
      %v1458 = vand.u32 %v831, 4294901760
      %1459 = vmatprep.subr.mxu0 %v1458
      %v1460 = vand.u32 %v830, 4294901760
      %1461 = vmatpush1.msra.mxu0 %v1460
      %v1462 = vand.u32 %v829, 4294901760
      %1463 = vmatprep.subr.mxu0 %v1462
      %v1464 = vand.u32 %v828, 4294901760
      %1465 = vmatpush1.msra.mxu0 %v1464
      %v1466 = vand.u32 %v827, 4294901760
      %1467 = vmatprep.subr.mxu0 %v1466
      %v1468 = vand.u32 %v826, 4294901760
      %1469 = vmatpush1.msra.mxu0 %v1468
      %v1470 = vand.u32 %v825, 4294901760
      %1471 = vmatprep.subr.mxu0 %v1470
      %v1472 = vand.u32 %v824, 4294901760
      %1473 = vmatpush1.msra.mxu0 %v1472
      %v1474 = vand.u32 %v823, 4294901760
      %1475 = vmatprep.subr.mxu0 %v1474
      %v1476 = vand.u32 %v822, 4294901760
      %1477 = vmatpush1.msra.mxu0 %v1476
      %v1478 = vand.u32 %v821, 4294901760
      %1479 = vmatprep.subr.mxu0 %v1478
      %v1480 = vand.u32 %v820, 4294901760
      %1481 = vmatpush1.msra.mxu0 %v1480
      %1482 = vmatprep.subr.mxu0 0.0
      %1483 = vmatpush2.msra.mxu0 0.0
      %1484 = vmatprep.subr.mxu0 0.0
      %1485 = vmatpush2.msra.mxu0 0.0
      %1486 = vmatprep.subr.mxu0 0.0
      %1487 = vmatpush2.msra.mxu0 0.0
      %1488 = vmatprep.subr.mxu0 0.0
      %1489 = vmatpush2.msra.mxu0 0.0
      %1490 = vmatprep.subr.mxu0 0.0
      %1491 = vmatpush2.msra.mxu0 0.0
      %1492 = vmatprep.subr.mxu0 0.0
      %1493 = vmatpush2.msra.mxu0 0.0
      %1494 = vmatprep.subr.mxu0 0.0
      %1495 = vmatpush2.msra.mxu0 0.0
      %1496 = vmatprep.subr.mxu0 0.0
      %1497 = vmatpush2.msra.mxu0 0.0
      %1498 = vmatprep.subr.mxu0 0.0
      %1499 = vmatpush2.msra.mxu0 0.0
      %1500 = vmatprep.subr.mxu0 0.0
      %1501 = vmatpush2.msra.mxu0 0.0
      %1502 = vmatprep.subr.mxu0 0.0
      %1503 = vmatpush2.msra.mxu0 0.0
      %1504 = vmatprep.subr.mxu0 0.0
      %1505 = vmatpush2.msra.mxu0 0.0
      %1506 = vmatprep.subr.mxu0 0.0
      %1507 = vmatpush2.msra.mxu0 0.0
      %1508 = vmatprep.subr.mxu0 0.0
      %1509 = vmatpush2.msra.mxu0 0.0
      %1510 = vmatprep.subr.mxu0 0.0
      %1511 = vmatpush2.msra.mxu0 0.0
      %1512 = vmatprep.subr.mxu0 0.0
      %1513 = vmatpush2.msra.mxu0 0.0
      %1514 = vmatprep.mubr.f32.mxu0 0.0
      %v1515 = vand.u32 %v840, 4294901760
      %1516 = vmatmul.mubr.f32.gmra.mxu0 %v1515
      %v1517 = vpop.f32.mrf.mxu0
      %v1518 = vadd.f32 %v1428, %v1517
      %v1519 = vpop.f32.mrf.mxu0
      %v1520 = vadd.f32 %v1430, %v1519
      %1521 = vdwg.mxu0
      %1522 = vst [vmem:[%s241] sm:$0xff] %v1518
      %1523 = vst [vmem:[%s241 + $0x8] sm:$0xff] %v1520
      %s1524 = smul.u32 2, %s20
      %p1525 = scmp.lt.s32.totalorder %s19, 1
      %s1526 = scalar_select %p1525, %s19, 1
      %p1527 = scmp.lt.s32.totalorder %s1524, 1
      %s1528 = scalar_select %p1527, %s1524, 1
      %s1529 = smul.addr %s1526, 2
      %s1530 = sadd.s32 %s1528, %s1529
      %s1531 = smul.addr %s1530, 8
      %s1532 = scalar_lea.vmem %s4, %s1531
      // Predicated region
      $region41: #{conv_up.1} parent=35 // pred_check
        %p1533 = pneg %p141
      $region42: #{conv_up.1} parent=35 // pred_check_branch
        %1535 = sbr.rel (%p1533) target = $region44
      $region43: #{conv_up.1} parent=35 // pred_region
        %s1536 = smul.u32 2, %s20
      $region44: #{conv_up.1} parent=35 // pred_fallthru
        _
    $region36: #{conv_up.1} parent=5 // pred_fallthru
      _
    %p1537 = scmp.le.s32.totalorder 2, %s10
    // Predicated region
    $region45: #{conv_up.1} parent=5 // pred_check
      %p1538 = pneg %p1537
    $region46: #{conv_up.1} parent=5 // pred_check_branch
      %1540 = sbr.rel (%p1538) target = $region48
    $region47: #{conv_up.1} parent=5 // pred_region
      %s1541 = ssub.s32 %s10, 2
      // Predicated region
      $region49: #{conv_up.1} parent=47 // pred_check
        %p1542 = pneg %p147
      $region50: #{conv_up.1} parent=47 // pred_check_branch
        %1544 = sbr.rel (%p1542) target = $region52
      $region51: #{conv_up.1} parent=47 // pred_region
        %s1545 = smul.u32 2, %s22
        %p1546 = scmp.lt.s32.totalorder %s21, 1
        %s1547 = scalar_select %p1546, %s21, 1
        %p1548 = scmp.lt.s32.totalorder %s1545, 1
        %s1549 = scalar_select %p1548, %s1545, 1
        %s1550 = smul.addr %s1547, 2
        %s1551 = sadd.s32 %s1549, %s1550
        %s1552 = smul.addr %s1551, 8
        %s1553 = scalar_lea.vmem %s4, %s1552
      $region52: #{conv_up.1} parent=47 // pred_fallthru
        _
    $region48: #{conv_up.1} parent=5 // pred_fallthru
      _
  $region6: #{conv_up.1} parent=0 // loop_footer
    %s14 = sadd.s32 1, %s10
  $region7: #{conv_up.1} parent=0 // loop_footer_branch
    %9 = sbr.rel target = $region3
  $region8: #{conv_up.1} parent=0 // loop_exit
    _

</llo_original>
